<compile_context>
chip_gen: v6e
topology: v6e:2x2x1
jax: 0.10.0
libtpu: 0.0.40
codegen_flags: <defaults>
</compile_context>

<pallas_src>
import functools

import jax
import jax.numpy as jnp
import numpy as np
from jax.experimental import pallas as pl
from jax.experimental.pallas import tpu as pltpu


def _lstm_kernel(x_ref,
                 w_ih0_ref, b0_ref,
                 w_big_ref, b1_ref,
                 w_fc_ref, b_fc_ref,
                 out_ref,
                 *, seq_len, hidden_dim):
    H = hidden_dim
    B = x_ref.shape[1]

    # Weights / biases loaded once; resident for the whole recurrence.
    w_ih0 = w_ih0_ref[...]          # (I, 4H)
    b0 = b0_ref[...]                # (1, 4H)
    w_big = w_big_ref[...]          # (2H, 8H) = [[Whh0^T, Wih1^T], [0, Whh1^T]]
    b1 = b1_ref[...]                # (1, 4H)

    def lstm_cell(gates, c_prev):
        # One sigmoid over the whole (B, 4H) vreg, tanh only on the g slice.
        sig = jax.nn.sigmoid(gates)
        i = sig[:, 0 * H:1 * H]
        f = sig[:, 1 * H:2 * H]
        o = sig[:, 3 * H:4 * H]
        g = jnp.tanh(gates[:, 2 * H:3 * H])
        c = f * c_prev + i * g
        h = o * jnp.tanh(c)
        return h, c

    # Hoisted (non-recurrent) layer-0 input projection for every timestep — off the
    # serial dependency chain.  input_dim == 1 => rank-1 broadcast multiply (VPU only).
    if x_ref.shape[-1] == 1:
        xg = [x_ref[t] * w_ih0 + b0 for t in range(seq_len)]
    else:
        xg = [jnp.dot(x_ref[t], w_ih0, preferred_element_type=jnp.float32) + b0
              for t in range(seq_len)]

    zeros = jnp.zeros((B, H), jnp.float32)
    # Prologue: layer-0 at t=0 (h0_{-1} == 0 -> no recurrent matmul needed).
    h0, c0 = lstm_cell(xg[0], zeros)        # h0_0, c0_0
    h1, c1 = zeros, zeros                   # h1_{-1}, c1_{-1}

    # Skewed, fully unrolled recurrence: exactly ONE MXU matmul per timestep.
    for t in range(seq_len):
        lhs = jnp.concatenate([h0, h1], axis=-1)                          # [h0_t | h1_{t-1}]  (B, 2H)
        fused = jnp.dot(lhs, w_big, preferred_element_type=jnp.float32)   # (B, 8H)
        # cols 4H:8H: h0_t @ Wih1^T + h1_{t-1} @ Whh1^T  -> layer-1 gates at t
        gates1 = fused[:, 4 * H:8 * H] + b1
        h1, c1 = lstm_cell(gates1, c1)
        if t + 1 < seq_len:
            # cols 0:4H: h0_t @ Whh0^T -> layer-0 recurrent term for step t+1
            gates0 = xg[t + 1] + fused[:, 0:4 * H]
            h0, c0 = lstm_cell(gates0, c0)

    # fc(out[:, -1, :]) fused into the kernel tail.  For output_dim == 1 this is a
    # VPU multiply + XLU lane reduce (no N=1 MXU push/pop round-trip).
    w_fc = w_fc_ref[...]                    # (O, H)
    b_fc = b_fc_ref[...]                    # (1, O)
    if w_fc.shape[0] == 1:
        out_ref[...] = jnp.sum(h1 * w_fc, axis=-1, keepdims=True) + b_fc
    else:
        out_ref[...] = (jnp.dot(h1, w_fc.T, preferred_element_type=jnp.float32)
                        + b_fc)


def lstm_forward(x, params, *, hidden_dim=32):
    """x: (batch, seq, input_dim) float32 -> (batch, output_dim) float32."""
    B, S, I = x.shape
    O = params["b_fc"].shape[1]

    # Pad batch to a multiple of 8 (sublane count): gate tensors fill whole vregs and
    # all stores are unmasked.  Padded rows are independent and sliced off afterwards.
    B_pad = ((B + 7) // 8) * 8
    if B_pad != B:
        x = jnp.pad(x, ((0, B_pad - B), (0, 0), (0, 0)))
    x_tm = jnp.transpose(x, (1, 0, 2))      # time-major (S, B_pad, I)

    kernel = functools.partial(_lstm_kernel, seq_len=S, hidden_dim=hidden_dim)
    vmem = pl.BlockSpec(memory_space=pltpu.MemorySpace.VMEM)  # whole array, VMEM-resident

    out = pl.pallas_call(
        kernel,
        out_shape=jax.ShapeDtypeStruct((B_pad, O), jnp.float32),
        in_specs=[vmem] * 7,                # x + 6 parameter tensors, all resident
        out_specs=vmem,
    )(x_tm,
      params["w_ih0"], params["b0"],
      params["w_big"], params["b1"],
      params["w_fc"], params["b_fc"])
    return out[:B]


def init_params(key, input_dim=1, hidden_dim=32, output_dim=1):
    """Deterministic params mirroring PyTorch's LSTM/Linear parameter shapes."""
    ks = jax.random.split(key, 10)
    s = 1.0 / np.sqrt(hidden_dim)
    H = hidden_dim

    def u(k, shape):
        return jax.random.uniform(k, shape, jnp.float32, -s, s)

    raw = dict(
        w_ih0=u(ks[0], (4 * H, input_dim)),
        w_hh0=u(ks[1], (4 * H, H)),
        b_ih0=u(ks[2], (4 * H,)),
        b_hh0=u(ks[3], (4 * H,)),
        w_ih1=u(ks[4], (4 * H, H)),
        w_hh1=u(ks[5], (4 * H, H)),
        b_ih1=u(ks[6], (4 * H,)),
        b_hh1=u(ks[7], (4 * H,)),
        w_fc=u(ks[8], (output_dim, H)),
        b_fc=u(ks[9], (output_dim,)),
    )
    # Kernel-friendly layout: pre-transposed (in_features, 4H) weights, fused
    # b_ih + b_hh biases, and the two dependent per-step matmuls fused into ONE
    # (2H, 8H) weight:
    #   rows 0:H  multiply h0_t,   rows H:2H multiply h1_{t-1}
    #   cols 0:4H  -> h0_t @ Whh0^T                       (layer-0 recurrent term, t+1)
    #   cols 4H:8H -> h0_t @ Wih1^T + h1_{t-1} @ Whh1^T   (layer-1 gates, t)
    top = jnp.concatenate([raw["w_hh0"].T, raw["w_ih1"].T], axis=1)           # (H, 8H)
    bot = jnp.concatenate([jnp.zeros((H, 4 * H), jnp.float32),
                           raw["w_hh1"].T], axis=1)                           # (H, 8H)
    params = dict(
        w_ih0=raw["w_ih0"].T,                              # (I, 4H)
        b0=(raw["b_ih0"] + raw["b_hh0"])[None, :],         # (1, 4H)
        w_big=jnp.concatenate([top, bot], axis=0),         # (2H, 8H)
        b1=(raw["b_ih1"] + raw["b_hh1"])[None, :],         # (1, 4H)
        w_fc=raw["w_fc"],                                  # (O, H)
        b_fc=raw["b_fc"][None, :],                         # (1, O)
    )
    return params, raw


def lstm_ref(x, raw):
    """Pure-JAX reference matching torch.nn.LSTM(batch_first=True) + Linear."""
    def run_layer(xs, w_ih, w_hh, b_ih, b_hh):
        B = xs.shape[1]
        H = w_hh.shape[1]

        def step(carry, x_t):
            h, c = carry
            gates = x_t @ w_ih.T + h @ w_hh.T + b_ih + b_hh
            i, f, g, o = jnp.split(gates, 4, axis=-1)
            i, f, o = jax.nn.sigmoid(i), jax.nn.sigmoid(f), jax.nn.sigmoid(o)
            g = jnp.tanh(g)
            c = f * c + i * g
            h = o * jnp.tanh(c)
            return (h, c), h

        init = (jnp.zeros((B, H), jnp.float32), jnp.zeros((B, H), jnp.float32))
        _, hs = jax.lax.scan(step, init, xs)
        return hs

    xs = jnp.transpose(x, (1, 0, 2))  # (S, B, I)
    h0s = run_layer(xs, raw["w_ih0"], raw["w_hh0"], raw["b_ih0"], raw["b_hh0"])
    h1s = run_layer(h0s, raw["w_ih1"], raw["w_hh1"], raw["b_ih1"], raw["b_hh1"])
    return h1s[-1] @ raw["w_fc"].T + raw["b_fc"]


if __name__ == "__main__":
    key = jax.random.PRNGKey(0)
    k_x, k_p = jax.random.split(key)

    batch, seq, input_dim, hidden_dim, output_dim = 2, 8, 1, 32, 1
    x = jax.random.normal(k_x, (batch, seq, input_dim), jnp.float32)
    params, raw = init_params(k_p, input_dim, hidden_dim, output_dim)

    out = lstm_forward(x, params, hidden_dim=hidden_dim)
    out = jax.block_until_ready(out)

    ref = jax.block_until_ready(lstm_ref(x, raw))
    np.testing.assert_allclose(np.asarray(out), np.asarray(ref),
                               rtol=1e-5, atol=1e-5)
    print("KERNEL_OK")
</pallas_src>

<mosaic_0001>
module attributes {stable_mosaic.version = 11 : i64} {
  func.func @_lstm_kernel(%arg0: memref<8x8x1xf32, #tpu.memory_space<vmem>>, %arg1: memref<1x128xf32, #tpu.memory_space<vmem>>, %arg2: memref<1x128xf32, #tpu.memory_space<vmem>>, %arg3: memref<64x256xf32, #tpu.memory_space<vmem>>, %arg4: memref<1x128xf32, #tpu.memory_space<vmem>>, %arg5: memref<1x32xf32, #tpu.memory_space<vmem>>, %arg6: memref<1x1xf32, #tpu.memory_space<vmem>>, %arg7: memref<8x1xf32, #tpu.memory_space<vmem>>) attributes {dimension_semantics = [], scalar_prefetch = 0 : i64, scratch_operands = 0 : i64, tpu.core_type = #tpu.core_type<tc>} {
    %c0 = arith.constant 0 : index
    %c0_0 = arith.constant 0 : index
    %0 = vector.load %arg1[%c0, %c0_0] : memref<1x128xf32, #tpu.memory_space<vmem>>, vector<1x128xf32>
    %c0_1 = arith.constant 0 : index
    %c0_2 = arith.constant 0 : index
    %1 = vector.load %arg2[%c0_1, %c0_2] : memref<1x128xf32, #tpu.memory_space<vmem>>, vector<1x128xf32>
    %c0_3 = arith.constant 0 : index
    %c0_4 = arith.constant 0 : index
    %2 = vector.load %arg3[%c0_3, %c0_4] : memref<64x256xf32, #tpu.memory_space<vmem>>, vector<64x256xf32>
    %c0_5 = arith.constant 0 : index
    %c0_6 = arith.constant 0 : index
    %3 = vector.load %arg4[%c0_5, %c0_6] : memref<1x128xf32, #tpu.memory_space<vmem>>, vector<1x128xf32>
    %c0_7 = arith.constant 0 : index
    %c0_8 = arith.constant 0 : index
    %c0_9 = arith.constant 0 : index
    %4 = vector.load %arg0[%c0_7, %c0_8, %c0_9] : memref<8x8x1xf32, #tpu.memory_space<vmem>>, vector<1x8x1xf32>
    %5 = vector.shape_cast %4 : vector<1x8x1xf32> to vector<8x1xf32>
    %6 = vector.broadcast %5 : vector<8x1xf32> to vector<8x128xf32>
    %7 = vector.broadcast %0 : vector<1x128xf32> to vector<8x128xf32>
    %8 = arith.mulf %6, %7 : vector<8x128xf32>
    %9 = vector.broadcast %1 : vector<1x128xf32> to vector<8x128xf32>
    %10 = arith.addf %8, %9 : vector<8x128xf32>
    %c1 = arith.constant 1 : index
    %c0_10 = arith.constant 0 : index
    %c0_11 = arith.constant 0 : index
    %11 = vector.load %arg0[%c1, %c0_10, %c0_11] : memref<8x8x1xf32, #tpu.memory_space<vmem>>, vector<1x8x1xf32>
    %12 = vector.shape_cast %11 : vector<1x8x1xf32> to vector<8x1xf32>
    %13 = vector.broadcast %12 : vector<8x1xf32> to vector<8x128xf32>
    %14 = vector.broadcast %0 : vector<1x128xf32> to vector<8x128xf32>
    %15 = arith.mulf %13, %14 : vector<8x128xf32>
    %16 = vector.broadcast %1 : vector<1x128xf32> to vector<8x128xf32>
    %17 = arith.addf %15, %16 : vector<8x128xf32>
    %c2 = arith.constant 2 : index
    %c0_12 = arith.constant 0 : index
    %c0_13 = arith.constant 0 : index
    %18 = vector.load %arg0[%c2, %c0_12, %c0_13] : memref<8x8x1xf32, #tpu.memory_space<vmem>>, vector<1x8x1xf32>
    %19 = vector.shape_cast %18 : vector<1x8x1xf32> to vector<8x1xf32>
    %20 = vector.broadcast %19 : vector<8x1xf32> to vector<8x128xf32>
    %21 = vector.broadcast %0 : vector<1x128xf32> to vector<8x128xf32>
    %22 = arith.mulf %20, %21 : vector<8x128xf32>
    %23 = vector.broadcast %1 : vector<1x128xf32> to vector<8x128xf32>
    %24 = arith.addf %22, %23 : vector<8x128xf32>
    %c3 = arith.constant 3 : index
    %c0_14 = arith.constant 0 : index
    %c0_15 = arith.constant 0 : index
    %25 = vector.load %arg0[%c3, %c0_14, %c0_15] : memref<8x8x1xf32, #tpu.memory_space<vmem>>, vector<1x8x1xf32>
    %26 = vector.shape_cast %25 : vector<1x8x1xf32> to vector<8x1xf32>
    %27 = vector.broadcast %26 : vector<8x1xf32> to vector<8x128xf32>
    %28 = vector.broadcast %0 : vector<1x128xf32> to vector<8x128xf32>
    %29 = arith.mulf %27, %28 : vector<8x128xf32>
    %30 = vector.broadcast %1 : vector<1x128xf32> to vector<8x128xf32>
    %31 = arith.addf %29, %30 : vector<8x128xf32>
    %c4 = arith.constant 4 : index
    %c0_16 = arith.constant 0 : index
    %c0_17 = arith.constant 0 : index
    %32 = vector.load %arg0[%c4, %c0_16, %c0_17] : memref<8x8x1xf32, #tpu.memory_space<vmem>>, vector<1x8x1xf32>
    %33 = vector.shape_cast %32 : vector<1x8x1xf32> to vector<8x1xf32>
    %34 = vector.broadcast %33 : vector<8x1xf32> to vector<8x128xf32>
    %35 = vector.broadcast %0 : vector<1x128xf32> to vector<8x128xf32>
    %36 = arith.mulf %34, %35 : vector<8x128xf32>
    %37 = vector.broadcast %1 : vector<1x128xf32> to vector<8x128xf32>
    %38 = arith.addf %36, %37 : vector<8x128xf32>
    %c5 = arith.constant 5 : index
    %c0_18 = arith.constant 0 : index
    %c0_19 = arith.constant 0 : index
    %39 = vector.load %arg0[%c5, %c0_18, %c0_19] : memref<8x8x1xf32, #tpu.memory_space<vmem>>, vector<1x8x1xf32>
    %40 = vector.shape_cast %39 : vector<1x8x1xf32> to vector<8x1xf32>
    %41 = vector.broadcast %40 : vector<8x1xf32> to vector<8x128xf32>
    %42 = vector.broadcast %0 : vector<1x128xf32> to vector<8x128xf32>
    %43 = arith.mulf %41, %42 : vector<8x128xf32>
    %44 = vector.broadcast %1 : vector<1x128xf32> to vector<8x128xf32>
    %45 = arith.addf %43, %44 : vector<8x128xf32>
    %c6 = arith.constant 6 : index
    %c0_20 = arith.constant 0 : index
    %c0_21 = arith.constant 0 : index
    %46 = vector.load %arg0[%c6, %c0_20, %c0_21] : memref<8x8x1xf32, #tpu.memory_space<vmem>>, vector<1x8x1xf32>
    %47 = vector.shape_cast %46 : vector<1x8x1xf32> to vector<8x1xf32>
    %48 = vector.broadcast %47 : vector<8x1xf32> to vector<8x128xf32>
    %49 = vector.broadcast %0 : vector<1x128xf32> to vector<8x128xf32>
    %50 = arith.mulf %48, %49 : vector<8x128xf32>
    %51 = vector.broadcast %1 : vector<1x128xf32> to vector<8x128xf32>
    %52 = arith.addf %50, %51 : vector<8x128xf32>
    %c7 = arith.constant 7 : index
    %c0_22 = arith.constant 0 : index
    %c0_23 = arith.constant 0 : index
    %53 = vector.load %arg0[%c7, %c0_22, %c0_23] : memref<8x8x1xf32, #tpu.memory_space<vmem>>, vector<1x8x1xf32>
    %54 = vector.shape_cast %53 : vector<1x8x1xf32> to vector<8x1xf32>
    %55 = vector.broadcast %54 : vector<8x1xf32> to vector<8x128xf32>
    %56 = vector.broadcast %0 : vector<1x128xf32> to vector<8x128xf32>
    %57 = arith.mulf %55, %56 : vector<8x128xf32>
    %58 = vector.broadcast %1 : vector<1x128xf32> to vector<8x128xf32>
    %59 = arith.addf %57, %58 : vector<8x128xf32>
    %cst = arith.constant 0.000000e+00 : f32
    %60 = vector.broadcast %cst : f32 to vector<8x32xf32>
    %61 = arith.negf %10 : vector<8x128xf32>
    %62 = math.exp %61 : vector<8x128xf32>
    %cst_24 = arith.constant 1.000000e+00 : f32
    %63 = vector.broadcast %cst_24 : f32 to vector<8x128xf32>
    %64 = arith.addf %63, %62 : vector<8x128xf32>
    %65 = arith.divf %63, %64 : vector<8x128xf32>
    %66 = vector.extract_strided_slice %65 {offsets = [0, 0], sizes = [8, 32], strides = [1, 1]} : vector<8x128xf32> to vector<8x32xf32>
    %67 = vector.extract_strided_slice %65 {offsets = [0, 32], sizes = [8, 32], strides = [1, 1]} : vector<8x128xf32> to vector<8x32xf32>
    %68 = vector.extract_strided_slice %65 {offsets = [0, 96], sizes = [8, 32], strides = [1, 1]} : vector<8x128xf32> to vector<8x32xf32>
    %69 = vector.extract_strided_slice %10 {offsets = [0, 64], sizes = [8, 32], strides = [1, 1]} : vector<8x128xf32> to vector<8x32xf32>
    %70 = math.tanh %69 : vector<8x32xf32>
    %71 = arith.mulf %67, %60 : vector<8x32xf32>
    %72 = arith.mulf %66, %70 : vector<8x32xf32>
    %73 = arith.addf %71, %72 : vector<8x32xf32>
    %74 = math.tanh %73 : vector<8x32xf32>
    %75 = arith.mulf %68, %74 : vector<8x32xf32>
    %76 = tpu.concatenate %75, %60 in 1 : vector<8x32xf32>, vector<8x32xf32> -> vector<8x64xf32>
    %cst_25 = arith.constant dense<0.000000e+00> : vector<8x256xf32>
    %77 = tpu.matmul %76, %2, %cst_25 {dimension_numbers = #tpu.dot_dimension_numbers<[1], [0], [0], [1], [0, 0, 1, 1], [], []>} : vector<8x64xf32>, vector<64x256xf32>, vector<8x256xf32> -> vector<8x256xf32>
    %78 = vector.extract_strided_slice %77 {offsets = [0, 128], sizes = [8, 128], strides = [1, 1]} : vector<8x256xf32> to vector<8x128xf32>
    %79 = vector.broadcast %3 : vector<1x128xf32> to vector<8x128xf32>
    %80 = arith.addf %78, %79 : vector<8x128xf32>
    %81 = arith.negf %80 : vector<8x128xf32>
    %82 = math.exp %81 : vector<8x128xf32>
    %cst_26 = arith.constant 1.000000e+00 : f32
    %83 = vector.broadcast %cst_26 : f32 to vector<8x128xf32>
    %84 = arith.addf %83, %82 : vector<8x128xf32>
    %85 = arith.divf %83, %84 : vector<8x128xf32>
    %86 = vector.extract_strided_slice %85 {offsets = [0, 0], sizes = [8, 32], strides = [1, 1]} : vector<8x128xf32> to vector<8x32xf32>
    %87 = vector.extract_strided_slice %85 {offsets = [0, 32], sizes = [8, 32], strides = [1, 1]} : vector<8x128xf32> to vector<8x32xf32>
    %88 = vector.extract_strided_slice %85 {offsets = [0, 96], sizes = [8, 32], strides = [1, 1]} : vector<8x128xf32> to vector<8x32xf32>
    %89 = vector.extract_strided_slice %80 {offsets = [0, 64], sizes = [8, 32], strides = [1, 1]} : vector<8x128xf32> to vector<8x32xf32>
    %90 = math.tanh %89 : vector<8x32xf32>
    %91 = arith.mulf %87, %60 : vector<8x32xf32>
    %92 = arith.mulf %86, %90 : vector<8x32xf32>
    %93 = arith.addf %91, %92 : vector<8x32xf32>
    %94 = math.tanh %93 : vector<8x32xf32>
    %95 = arith.mulf %88, %94 : vector<8x32xf32>
    %96 = vector.extract_strided_slice %77 {offsets = [0, 0], sizes = [8, 128], strides = [1, 1]} : vector<8x256xf32> to vector<8x128xf32>
    %97 = arith.addf %17, %96 : vector<8x128xf32>
    %98 = arith.negf %97 : vector<8x128xf32>
    %99 = math.exp %98 : vector<8x128xf32>
    %cst_27 = arith.constant 1.000000e+00 : f32
    %100 = vector.broadcast %cst_27 : f32 to vector<8x128xf32>
    %101 = arith.addf %100, %99 : vector<8x128xf32>
    %102 = arith.divf %100, %101 : vector<8x128xf32>
    %103 = vector.extract_strided_slice %102 {offsets = [0, 0], sizes = [8, 32], strides = [1, 1]} : vector<8x128xf32> to vector<8x32xf32>
    %104 = vector.extract_strided_slice %102 {offsets = [0, 32], sizes = [8, 32], strides = [1, 1]} : vector<8x128xf32> to vector<8x32xf32>
    %105 = vector.extract_strided_slice %102 {offsets = [0, 96], sizes = [8, 32], strides = [1, 1]} : vector<8x128xf32> to vector<8x32xf32>
    %106 = vector.extract_strided_slice %97 {offsets = [0, 64], sizes = [8, 32], strides = [1, 1]} : vector<8x128xf32> to vector<8x32xf32>
    %107 = math.tanh %106 : vector<8x32xf32>
    %108 = arith.mulf %104, %73 : vector<8x32xf32>
    %109 = arith.mulf %103, %107 : vector<8x32xf32>
    %110 = arith.addf %108, %109 : vector<8x32xf32>
    %111 = math.tanh %110 : vector<8x32xf32>
    %112 = arith.mulf %105, %111 : vector<8x32xf32>
    %113 = tpu.concatenate %112, %95 in 1 : vector<8x32xf32>, vector<8x32xf32> -> vector<8x64xf32>
    %cst_28 = arith.constant dense<0.000000e+00> : vector<8x256xf32>
    %114 = tpu.matmul %113, %2, %cst_28 {dimension_numbers = #tpu.dot_dimension_numbers<[1], [0], [0], [1], [0, 0, 1, 1], [], []>} : vector<8x64xf32>, vector<64x256xf32>, vector<8x256xf32> -> vector<8x256xf32>
    %115 = vector.extract_strided_slice %114 {offsets = [0, 128], sizes = [8, 128], strides = [1, 1]} : vector<8x256xf32> to vector<8x128xf32>
    %116 = vector.broadcast %3 : vector<1x128xf32> to vector<8x128xf32>
    %117 = arith.addf %115, %116 : vector<8x128xf32>
    %118 = arith.negf %117 : vector<8x128xf32>
    %119 = math.exp %118 : vector<8x128xf32>
    %cst_29 = arith.constant 1.000000e+00 : f32
    %120 = vector.broadcast %cst_29 : f32 to vector<8x128xf32>
    %121 = arith.addf %120, %119 : vector<8x128xf32>
    %122 = arith.divf %120, %121 : vector<8x128xf32>
    %123 = vector.extract_strided_slice %122 {offsets = [0, 0], sizes = [8, 32], strides = [1, 1]} : vector<8x128xf32> to vector<8x32xf32>
    %124 = vector.extract_strided_slice %122 {offsets = [0, 32], sizes = [8, 32], strides = [1, 1]} : vector<8x128xf32> to vector<8x32xf32>
    %125 = vector.extract_strided_slice %122 {offsets = [0, 96], sizes = [8, 32], strides = [1, 1]} : vector<8x128xf32> to vector<8x32xf32>
    %126 = vector.extract_strided_slice %117 {offsets = [0, 64], sizes = [8, 32], strides = [1, 1]} : vector<8x128xf32> to vector<8x32xf32>
    %127 = math.tanh %126 : vector<8x32xf32>
    %128 = arith.mulf %124, %93 : vector<8x32xf32>
    %129 = arith.mulf %123, %127 : vector<8x32xf32>
    %130 = arith.addf %128, %129 : vector<8x32xf32>
    %131 = math.tanh %130 : vector<8x32xf32>
    %132 = arith.mulf %125, %131 : vector<8x32xf32>
    %133 = vector.extract_strided_slice %114 {offsets = [0, 0], sizes = [8, 128], strides = [1, 1]} : vector<8x256xf32> to vector<8x128xf32>
    %134 = arith.addf %24, %133 : vector<8x128xf32>
    %135 = arith.negf %134 : vector<8x128xf32>
    %136 = math.exp %135 : vector<8x128xf32>
    %cst_30 = arith.constant 1.000000e+00 : f32
    %137 = vector.broadcast %cst_30 : f32 to vector<8x128xf32>
    %138 = arith.addf %137, %136 : vector<8x128xf32>
    %139 = arith.divf %137, %138 : vector<8x128xf32>
    %140 = vector.extract_strided_slice %139 {offsets = [0, 0], sizes = [8, 32], strides = [1, 1]} : vector<8x128xf32> to vector<8x32xf32>
    %141 = vector.extract_strided_slice %139 {offsets = [0, 32], sizes = [8, 32], strides = [1, 1]} : vector<8x128xf32> to vector<8x32xf32>
    %142 = vector.extract_strided_slice %139 {offsets = [0, 96], sizes = [8, 32], strides = [1, 1]} : vector<8x128xf32> to vector<8x32xf32>
    %143 = vector.extract_strided_slice %134 {offsets = [0, 64], sizes = [8, 32], strides = [1, 1]} : vector<8x128xf32> to vector<8x32xf32>
    %144 = math.tanh %143 : vector<8x32xf32>
    %145 = arith.mulf %141, %110 : vector<8x32xf32>
    %146 = arith.mulf %140, %144 : vector<8x32xf32>
    %147 = arith.addf %145, %146 : vector<8x32xf32>
    %148 = math.tanh %147 : vector<8x32xf32>
    %149 = arith.mulf %142, %148 : vector<8x32xf32>
    %150 = tpu.concatenate %149, %132 in 1 : vector<8x32xf32>, vector<8x32xf32> -> vector<8x64xf32>
    %cst_31 = arith.constant dense<0.000000e+00> : vector<8x256xf32>
    %151 = tpu.matmul %150, %2, %cst_31 {dimension_numbers = #tpu.dot_dimension_numbers<[1], [0], [0], [1], [0, 0, 1, 1], [], []>} : vector<8x64xf32>, vector<64x256xf32>, vector<8x256xf32> -> vector<8x256xf32>
    %152 = vector.extract_strided_slice %151 {offsets = [0, 128], sizes = [8, 128], strides = [1, 1]} : vector<8x256xf32> to vector<8x128xf32>
    %153 = vector.broadcast %3 : vector<1x128xf32> to vector<8x128xf32>
    %154 = arith.addf %152, %153 : vector<8x128xf32>
    %155 = arith.negf %154 : vector<8x128xf32>
    %156 = math.exp %155 : vector<8x128xf32>
    %cst_32 = arith.constant 1.000000e+00 : f32
    %157 = vector.broadcast %cst_32 : f32 to vector<8x128xf32>
    %158 = arith.addf %157, %156 : vector<8x128xf32>
    %159 = arith.divf %157, %158 : vector<8x128xf32>
    %160 = vector.extract_strided_slice %159 {offsets = [0, 0], sizes = [8, 32], strides = [1, 1]} : vector<8x128xf32> to vector<8x32xf32>
    %161 = vector.extract_strided_slice %159 {offsets = [0, 32], sizes = [8, 32], strides = [1, 1]} : vector<8x128xf32> to vector<8x32xf32>
    %162 = vector.extract_strided_slice %159 {offsets = [0, 96], sizes = [8, 32], strides = [1, 1]} : vector<8x128xf32> to vector<8x32xf32>
    %163 = vector.extract_strided_slice %154 {offsets = [0, 64], sizes = [8, 32], strides = [1, 1]} : vector<8x128xf32> to vector<8x32xf32>
    %164 = math.tanh %163 : vector<8x32xf32>
    %165 = arith.mulf %161, %130 : vector<8x32xf32>
    %166 = arith.mulf %160, %164 : vector<8x32xf32>
    %167 = arith.addf %165, %166 : vector<8x32xf32>
    %168 = math.tanh %167 : vector<8x32xf32>
    %169 = arith.mulf %162, %168 : vector<8x32xf32>
    %170 = vector.extract_strided_slice %151 {offsets = [0, 0], sizes = [8, 128], strides = [1, 1]} : vector<8x256xf32> to vector<8x128xf32>
    %171 = arith.addf %31, %170 : vector<8x128xf32>
    %172 = arith.negf %171 : vector<8x128xf32>
    %173 = math.exp %172 : vector<8x128xf32>
    %cst_33 = arith.constant 1.000000e+00 : f32
    %174 = vector.broadcast %cst_33 : f32 to vector<8x128xf32>
    %175 = arith.addf %174, %173 : vector<8x128xf32>
    %176 = arith.divf %174, %175 : vector<8x128xf32>
    %177 = vector.extract_strided_slice %176 {offsets = [0, 0], sizes = [8, 32], strides = [1, 1]} : vector<8x128xf32> to vector<8x32xf32>
    %178 = vector.extract_strided_slice %176 {offsets = [0, 32], sizes = [8, 32], strides = [1, 1]} : vector<8x128xf32> to vector<8x32xf32>
    %179 = vector.extract_strided_slice %176 {offsets = [0, 96], sizes = [8, 32], strides = [1, 1]} : vector<8x128xf32> to vector<8x32xf32>
    %180 = vector.extract_strided_slice %171 {offsets = [0, 64], sizes = [8, 32], strides = [1, 1]} : vector<8x128xf32> to vector<8x32xf32>
    %181 = math.tanh %180 : vector<8x32xf32>
    %182 = arith.mulf %178, %147 : vector<8x32xf32>
    %183 = arith.mulf %177, %181 : vector<8x32xf32>
    %184 = arith.addf %182, %183 : vector<8x32xf32>
    %185 = math.tanh %184 : vector<8x32xf32>
    %186 = arith.mulf %179, %185 : vector<8x32xf32>
    %187 = tpu.concatenate %186, %169 in 1 : vector<8x32xf32>, vector<8x32xf32> -> vector<8x64xf32>
    %cst_34 = arith.constant dense<0.000000e+00> : vector<8x256xf32>
    %188 = tpu.matmul %187, %2, %cst_34 {dimension_numbers = #tpu.dot_dimension_numbers<[1], [0], [0], [1], [0, 0, 1, 1], [], []>} : vector<8x64xf32>, vector<64x256xf32>, vector<8x256xf32> -> vector<8x256xf32>
    %189 = vector.extract_strided_slice %188 {offsets = [0, 128], sizes = [8, 128], strides = [1, 1]} : vector<8x256xf32> to vector<8x128xf32>
    %190 = vector.broadcast %3 : vector<1x128xf32> to vector<8x128xf32>
    %191 = arith.addf %189, %190 : vector<8x128xf32>
    %192 = arith.negf %191 : vector<8x128xf32>
    %193 = math.exp %192 : vector<8x128xf32>
    %cst_35 = arith.constant 1.000000e+00 : f32
    %194 = vector.broadcast %cst_35 : f32 to vector<8x128xf32>
    %195 = arith.addf %194, %193 : vector<8x128xf32>
    %196 = arith.divf %194, %195 : vector<8x128xf32>
    %197 = vector.extract_strided_slice %196 {offsets = [0, 0], sizes = [8, 32], strides = [1, 1]} : vector<8x128xf32> to vector<8x32xf32>
    %198 = vector.extract_strided_slice %196 {offsets = [0, 32], sizes = [8, 32], strides = [1, 1]} : vector<8x128xf32> to vector<8x32xf32>
    %199 = vector.extract_strided_slice %196 {offsets = [0, 96], sizes = [8, 32], strides = [1, 1]} : vector<8x128xf32> to vector<8x32xf32>
    %200 = vector.extract_strided_slice %191 {offsets = [0, 64], sizes = [8, 32], strides = [1, 1]} : vector<8x128xf32> to vector<8x32xf32>
    %201 = math.tanh %200 : vector<8x32xf32>
    %202 = arith.mulf %198, %167 : vector<8x32xf32>
    %203 = arith.mulf %197, %201 : vector<8x32xf32>
    %204 = arith.addf %202, %203 : vector<8x32xf32>
    %205 = math.tanh %204 : vector<8x32xf32>
    %206 = arith.mulf %199, %205 : vector<8x32xf32>
    %207 = vector.extract_strided_slice %188 {offsets = [0, 0], sizes = [8, 128], strides = [1, 1]} : vector<8x256xf32> to vector<8x128xf32>
    %208 = arith.addf %38, %207 : vector<8x128xf32>
    %209 = arith.negf %208 : vector<8x128xf32>
    %210 = math.exp %209 : vector<8x128xf32>
    %cst_36 = arith.constant 1.000000e+00 : f32
    %211 = vector.broadcast %cst_36 : f32 to vector<8x128xf32>
    %212 = arith.addf %211, %210 : vector<8x128xf32>
    %213 = arith.divf %211, %212 : vector<8x128xf32>
    %214 = vector.extract_strided_slice %213 {offsets = [0, 0], sizes = [8, 32], strides = [1, 1]} : vector<8x128xf32> to vector<8x32xf32>
    %215 = vector.extract_strided_slice %213 {offsets = [0, 32], sizes = [8, 32], strides = [1, 1]} : vector<8x128xf32> to vector<8x32xf32>
    %216 = vector.extract_strided_slice %213 {offsets = [0, 96], sizes = [8, 32], strides = [1, 1]} : vector<8x128xf32> to vector<8x32xf32>
    %217 = vector.extract_strided_slice %208 {offsets = [0, 64], sizes = [8, 32], strides = [1, 1]} : vector<8x128xf32> to vector<8x32xf32>
    %218 = math.tanh %217 : vector<8x32xf32>
    %219 = arith.mulf %215, %184 : vector<8x32xf32>
    %220 = arith.mulf %214, %218 : vector<8x32xf32>
    %221 = arith.addf %219, %220 : vector<8x32xf32>
    %222 = math.tanh %221 : vector<8x32xf32>
    %223 = arith.mulf %216, %222 : vector<8x32xf32>
    %224 = tpu.concatenate %223, %206 in 1 : vector<8x32xf32>, vector<8x32xf32> -> vector<8x64xf32>
    %cst_37 = arith.constant dense<0.000000e+00> : vector<8x256xf32>
    %225 = tpu.matmul %224, %2, %cst_37 {dimension_numbers = #tpu.dot_dimension_numbers<[1], [0], [0], [1], [0, 0, 1, 1], [], []>} : vector<8x64xf32>, vector<64x256xf32>, vector<8x256xf32> -> vector<8x256xf32>
    %226 = vector.extract_strided_slice %225 {offsets = [0, 128], sizes = [8, 128], strides = [1, 1]} : vector<8x256xf32> to vector<8x128xf32>
    %227 = vector.broadcast %3 : vector<1x128xf32> to vector<8x128xf32>
    %228 = arith.addf %226, %227 : vector<8x128xf32>
    %229 = arith.negf %228 : vector<8x128xf32>
    %230 = math.exp %229 : vector<8x128xf32>
    %cst_38 = arith.constant 1.000000e+00 : f32
    %231 = vector.broadcast %cst_38 : f32 to vector<8x128xf32>
    %232 = arith.addf %231, %230 : vector<8x128xf32>
    %233 = arith.divf %231, %232 : vector<8x128xf32>
    %234 = vector.extract_strided_slice %233 {offsets = [0, 0], sizes = [8, 32], strides = [1, 1]} : vector<8x128xf32> to vector<8x32xf32>
    %235 = vector.extract_strided_slice %233 {offsets = [0, 32], sizes = [8, 32], strides = [1, 1]} : vector<8x128xf32> to vector<8x32xf32>
    %236 = vector.extract_strided_slice %233 {offsets = [0, 96], sizes = [8, 32], strides = [1, 1]} : vector<8x128xf32> to vector<8x32xf32>
    %237 = vector.extract_strided_slice %228 {offsets = [0, 64], sizes = [8, 32], strides = [1, 1]} : vector<8x128xf32> to vector<8x32xf32>
    %238 = math.tanh %237 : vector<8x32xf32>
    %239 = arith.mulf %235, %204 : vector<8x32xf32>
    %240 = arith.mulf %234, %238 : vector<8x32xf32>
    %241 = arith.addf %239, %240 : vector<8x32xf32>
    %242 = math.tanh %241 : vector<8x32xf32>
    %243 = arith.mulf %236, %242 : vector<8x32xf32>
    %244 = vector.extract_strided_slice %225 {offsets = [0, 0], sizes = [8, 128], strides = [1, 1]} : vector<8x256xf32> to vector<8x128xf32>
    %245 = arith.addf %45, %244 : vector<8x128xf32>
    %246 = arith.negf %245 : vector<8x128xf32>
    %247 = math.exp %246 : vector<8x128xf32>
    %cst_39 = arith.constant 1.000000e+00 : f32
    %248 = vector.broadcast %cst_39 : f32 to vector<8x128xf32>
    %249 = arith.addf %248, %247 : vector<8x128xf32>
    %250 = arith.divf %248, %249 : vector<8x128xf32>
    %251 = vector.extract_strided_slice %250 {offsets = [0, 0], sizes = [8, 32], strides = [1, 1]} : vector<8x128xf32> to vector<8x32xf32>
    %252 = vector.extract_strided_slice %250 {offsets = [0, 32], sizes = [8, 32], strides = [1, 1]} : vector<8x128xf32> to vector<8x32xf32>
    %253 = vector.extract_strided_slice %250 {offsets = [0, 96], sizes = [8, 32], strides = [1, 1]} : vector<8x128xf32> to vector<8x32xf32>
    %254 = vector.extract_strided_slice %245 {offsets = [0, 64], sizes = [8, 32], strides = [1, 1]} : vector<8x128xf32> to vector<8x32xf32>
    %255 = math.tanh %254 : vector<8x32xf32>
    %256 = arith.mulf %252, %221 : vector<8x32xf32>
    %257 = arith.mulf %251, %255 : vector<8x32xf32>
    %258 = arith.addf %256, %257 : vector<8x32xf32>
    %259 = math.tanh %258 : vector<8x32xf32>
    %260 = arith.mulf %253, %259 : vector<8x32xf32>
    %261 = tpu.concatenate %260, %243 in 1 : vector<8x32xf32>, vector<8x32xf32> -> vector<8x64xf32>
    %cst_40 = arith.constant dense<0.000000e+00> : vector<8x256xf32>
    %262 = tpu.matmul %261, %2, %cst_40 {dimension_numbers = #tpu.dot_dimension_numbers<[1], [0], [0], [1], [0, 0, 1, 1], [], []>} : vector<8x64xf32>, vector<64x256xf32>, vector<8x256xf32> -> vector<8x256xf32>
    %263 = vector.extract_strided_slice %262 {offsets = [0, 128], sizes = [8, 128], strides = [1, 1]} : vector<8x256xf32> to vector<8x128xf32>
    %264 = vector.broadcast %3 : vector<1x128xf32> to vector<8x128xf32>
    %265 = arith.addf %263, %264 : vector<8x128xf32>
    %266 = arith.negf %265 : vector<8x128xf32>
    %267 = math.exp %266 : vector<8x128xf32>
    %cst_41 = arith.constant 1.000000e+00 : f32
    %268 = vector.broadcast %cst_41 : f32 to vector<8x128xf32>
    %269 = arith.addf %268, %267 : vector<8x128xf32>
    %270 = arith.divf %268, %269 : vector<8x128xf32>
    %271 = vector.extract_strided_slice %270 {offsets = [0, 0], sizes = [8, 32], strides = [1, 1]} : vector<8x128xf32> to vector<8x32xf32>
    %272 = vector.extract_strided_slice %270 {offsets = [0, 32], sizes = [8, 32], strides = [1, 1]} : vector<8x128xf32> to vector<8x32xf32>
    %273 = vector.extract_strided_slice %270 {offsets = [0, 96], sizes = [8, 32], strides = [1, 1]} : vector<8x128xf32> to vector<8x32xf32>
    %274 = vector.extract_strided_slice %265 {offsets = [0, 64], sizes = [8, 32], strides = [1, 1]} : vector<8x128xf32> to vector<8x32xf32>
    %275 = math.tanh %274 : vector<8x32xf32>
    %276 = arith.mulf %272, %241 : vector<8x32xf32>
    %277 = arith.mulf %271, %275 : vector<8x32xf32>
    %278 = arith.addf %276, %277 : vector<8x32xf32>
    %279 = math.tanh %278 : vector<8x32xf32>
    %280 = arith.mulf %273, %279 : vector<8x32xf32>
    %281 = vector.extract_strided_slice %262 {offsets = [0, 0], sizes = [8, 128], strides = [1, 1]} : vector<8x256xf32> to vector<8x128xf32>
    %282 = arith.addf %52, %281 : vector<8x128xf32>
    %283 = arith.negf %282 : vector<8x128xf32>
    %284 = math.exp %283 : vector<8x128xf32>
    %cst_42 = arith.constant 1.000000e+00 : f32
    %285 = vector.broadcast %cst_42 : f32 to vector<8x128xf32>
    %286 = arith.addf %285, %284 : vector<8x128xf32>
    %287 = arith.divf %285, %286 : vector<8x128xf32>
    %288 = vector.extract_strided_slice %287 {offsets = [0, 0], sizes = [8, 32], strides = [1, 1]} : vector<8x128xf32> to vector<8x32xf32>
    %289 = vector.extract_strided_slice %287 {offsets = [0, 32], sizes = [8, 32], strides = [1, 1]} : vector<8x128xf32> to vector<8x32xf32>
    %290 = vector.extract_strided_slice %287 {offsets = [0, 96], sizes = [8, 32], strides = [1, 1]} : vector<8x128xf32> to vector<8x32xf32>
    %291 = vector.extract_strided_slice %282 {offsets = [0, 64], sizes = [8, 32], strides = [1, 1]} : vector<8x128xf32> to vector<8x32xf32>
    %292 = math.tanh %291 : vector<8x32xf32>
    %293 = arith.mulf %289, %258 : vector<8x32xf32>
    %294 = arith.mulf %288, %292 : vector<8x32xf32>
    %295 = arith.addf %293, %294 : vector<8x32xf32>
    %296 = math.tanh %295 : vector<8x32xf32>
    %297 = arith.mulf %290, %296 : vector<8x32xf32>
    %298 = tpu.concatenate %297, %280 in 1 : vector<8x32xf32>, vector<8x32xf32> -> vector<8x64xf32>
    %cst_43 = arith.constant dense<0.000000e+00> : vector<8x256xf32>
    %299 = tpu.matmul %298, %2, %cst_43 {dimension_numbers = #tpu.dot_dimension_numbers<[1], [0], [0], [1], [0, 0, 1, 1], [], []>} : vector<8x64xf32>, vector<64x256xf32>, vector<8x256xf32> -> vector<8x256xf32>
    %300 = vector.extract_strided_slice %299 {offsets = [0, 128], sizes = [8, 128], strides = [1, 1]} : vector<8x256xf32> to vector<8x128xf32>
    %301 = vector.broadcast %3 : vector<1x128xf32> to vector<8x128xf32>
    %302 = arith.addf %300, %301 : vector<8x128xf32>
    %303 = arith.negf %302 : vector<8x128xf32>
    %304 = math.exp %303 : vector<8x128xf32>
    %cst_44 = arith.constant 1.000000e+00 : f32
    %305 = vector.broadcast %cst_44 : f32 to vector<8x128xf32>
    %306 = arith.addf %305, %304 : vector<8x128xf32>
    %307 = arith.divf %305, %306 : vector<8x128xf32>
    %308 = vector.extract_strided_slice %307 {offsets = [0, 0], sizes = [8, 32], strides = [1, 1]} : vector<8x128xf32> to vector<8x32xf32>
    %309 = vector.extract_strided_slice %307 {offsets = [0, 32], sizes = [8, 32], strides = [1, 1]} : vector<8x128xf32> to vector<8x32xf32>
    %310 = vector.extract_strided_slice %307 {offsets = [0, 96], sizes = [8, 32], strides = [1, 1]} : vector<8x128xf32> to vector<8x32xf32>
    %311 = vector.extract_strided_slice %302 {offsets = [0, 64], sizes = [8, 32], strides = [1, 1]} : vector<8x128xf32> to vector<8x32xf32>
    %312 = math.tanh %311 : vector<8x32xf32>
    %313 = arith.mulf %309, %278 : vector<8x32xf32>
    %314 = arith.mulf %308, %312 : vector<8x32xf32>
    %315 = arith.addf %313, %314 : vector<8x32xf32>
    %316 = math.tanh %315 : vector<8x32xf32>
    %317 = arith.mulf %310, %316 : vector<8x32xf32>
    %318 = vector.extract_strided_slice %299 {offsets = [0, 0], sizes = [8, 128], strides = [1, 1]} : vector<8x256xf32> to vector<8x128xf32>
    %319 = arith.addf %59, %318 : vector<8x128xf32>
    %320 = arith.negf %319 : vector<8x128xf32>
    %321 = math.exp %320 : vector<8x128xf32>
    %cst_45 = arith.constant 1.000000e+00 : f32
    %322 = vector.broadcast %cst_45 : f32 to vector<8x128xf32>
    %323 = arith.addf %322, %321 : vector<8x128xf32>
    %324 = arith.divf %322, %323 : vector<8x128xf32>
    %325 = vector.extract_strided_slice %324 {offsets = [0, 0], sizes = [8, 32], strides = [1, 1]} : vector<8x128xf32> to vector<8x32xf32>
    %326 = vector.extract_strided_slice %324 {offsets = [0, 32], sizes = [8, 32], strides = [1, 1]} : vector<8x128xf32> to vector<8x32xf32>
    %327 = vector.extract_strided_slice %324 {offsets = [0, 96], sizes = [8, 32], strides = [1, 1]} : vector<8x128xf32> to vector<8x32xf32>
    %328 = vector.extract_strided_slice %319 {offsets = [0, 64], sizes = [8, 32], strides = [1, 1]} : vector<8x128xf32> to vector<8x32xf32>
    %329 = math.tanh %328 : vector<8x32xf32>
    %330 = arith.mulf %326, %295 : vector<8x32xf32>
    %331 = arith.mulf %325, %329 : vector<8x32xf32>
    %332 = arith.addf %330, %331 : vector<8x32xf32>
    %333 = math.tanh %332 : vector<8x32xf32>
    %334 = arith.mulf %327, %333 : vector<8x32xf32>
    %335 = tpu.concatenate %334, %317 in 1 : vector<8x32xf32>, vector<8x32xf32> -> vector<8x64xf32>
    %cst_46 = arith.constant dense<0.000000e+00> : vector<8x256xf32>
    %336 = tpu.matmul %335, %2, %cst_46 {dimension_numbers = #tpu.dot_dimension_numbers<[1], [0], [0], [1], [0, 0, 1, 1], [], []>} : vector<8x64xf32>, vector<64x256xf32>, vector<8x256xf32> -> vector<8x256xf32>
    %337 = vector.extract_strided_slice %336 {offsets = [0, 128], sizes = [8, 128], strides = [1, 1]} : vector<8x256xf32> to vector<8x128xf32>
    %338 = vector.broadcast %3 : vector<1x128xf32> to vector<8x128xf32>
    %339 = arith.addf %337, %338 : vector<8x128xf32>
    %340 = arith.negf %339 : vector<8x128xf32>
    %341 = math.exp %340 : vector<8x128xf32>
    %cst_47 = arith.constant 1.000000e+00 : f32
    %342 = vector.broadcast %cst_47 : f32 to vector<8x128xf32>
    %343 = arith.addf %342, %341 : vector<8x128xf32>
    %344 = arith.divf %342, %343 : vector<8x128xf32>
    %345 = vector.extract_strided_slice %344 {offsets = [0, 0], sizes = [8, 32], strides = [1, 1]} : vector<8x128xf32> to vector<8x32xf32>
    %346 = vector.extract_strided_slice %344 {offsets = [0, 32], sizes = [8, 32], strides = [1, 1]} : vector<8x128xf32> to vector<8x32xf32>
    %347 = vector.extract_strided_slice %344 {offsets = [0, 96], sizes = [8, 32], strides = [1, 1]} : vector<8x128xf32> to vector<8x32xf32>
    %348 = vector.extract_strided_slice %339 {offsets = [0, 64], sizes = [8, 32], strides = [1, 1]} : vector<8x128xf32> to vector<8x32xf32>
    %349 = math.tanh %348 : vector<8x32xf32>
    %350 = arith.mulf %346, %315 : vector<8x32xf32>
    %351 = arith.mulf %345, %349 : vector<8x32xf32>
    %352 = arith.addf %350, %351 : vector<8x32xf32>
    %353 = math.tanh %352 : vector<8x32xf32>
    %354 = arith.mulf %347, %353 : vector<8x32xf32>
    %c0_48 = arith.constant 0 : index
    %c0_49 = arith.constant 0 : index
    %355 = vector.load %arg5[%c0_48, %c0_49] : memref<1x32xf32, #tpu.memory_space<vmem>>, vector<1x32xf32>
    %c0_50 = arith.constant 0 : index
    %c0_51 = arith.constant 0 : index
    %356 = vector.load %arg6[%c0_50, %c0_51] : memref<1x1xf32, #tpu.memory_space<vmem>>, vector<1x1xf32>
    %357 = vector.broadcast %355 : vector<1x32xf32> to vector<8x32xf32>
    %358 = arith.mulf %354, %357 : vector<8x32xf32>
    %cst_52 = arith.constant dense<0.000000e+00> : vector<8xf32>
    %359 = vector.multi_reduction <add>, %358, %cst_52 [1] : vector<8x32xf32> to vector<8xf32>
    %360 = vector.shape_cast %359 : vector<8xf32> to vector<8x1xf32>
    %361 = vector.broadcast %356 : vector<1x1xf32> to vector<8x1xf32>
    %362 = arith.addf %360, %361 : vector<8x1xf32>
    %c0_53 = arith.constant 0 : index
    %c0_54 = arith.constant 0 : index
    %363 = vector.load %arg7[%c0_53, %c0_54] : memref<8x1xf32, #tpu.memory_space<vmem>>, vector<8x1xf32>
    tpu.vector_store %arg7[%c0_53, %c0_54], %362 {strides = array<i32>} : memref<8x1xf32, #tpu.memory_space<vmem>>, vector<8x1xf32>,
    return
  }
}

</mosaic_0001>

<llo_original>
// kernel: tpu_custom_call.1
$region0: #{tpu_custom_call.1}
  #allocation0 [shape = 'u32[]', space=smem, size = 0x4, offset = 0x4, fixed_abs, tag = 'smem constant byte address 0x4 - core index']
  #allocation1 [shape = 'u32[144,128]{1,0:T(1,128)}', space=vmem, size = 0x12000, scoped, tag = 'internal scratch']
  #allocation2 [shape = 'f32[1,1]{1,0:T(1,128)S(1)}', space=vmem, size = 0x200, scoped, tag = 'scoped memory for tpu_custom_call.1']
  %s0 = inlined_call_operand.vmem [shape: f32[8,8,1], index: 0, kind: input, shape index: {}]
  %s1 = inlined_call_operand.vmem [shape: f32[1,128], index: 1, kind: input, shape index: {}]
  %s2 = inlined_call_operand.vmem [shape: f32[1,128], index: 2, kind: input, shape index: {}]
  %s3 = inlined_call_operand.hbm [shape: f32[64,256], index: 3, kind: input, shape index: {}]
  %s4 = inlined_call_operand.vmem [shape: f32[1,128], index: 4, kind: input, shape index: {}]
  %s5 = inlined_call_operand.vmem [shape: f32[1,32], index: 5, kind: input, shape index: {}]
  %s6 = inlined_call_operand.<no memory space> [shape: f32[1,1], index: 6, kind: input, shape index: {}]
  %s7 = inlined_call_operand.vmem [shape: f32[8,1], index: 7, kind: output, shape index: {}]
  %s8 = sld [smem:[#allocation0]]
  $region42: #{tpu_custom_call.1} parent=0
    _
  %s10 = ssub.s32 1, %s8
  %s11 = scalar_select 0, %s10, %s8
  %v12 = vstv %s6
  %13 = vst [vmem:[#allocation2] sm:$0x1] %v12
  $region1: #{tpu_custom_call.1} parent=0
    #allocation3 [shape = 'u8[65536]{0}', space=vmem, size = 0x10000, scoped, tag = 'input window, operand 3, single buffered']
    #allocation4 [shape = 's32[1]{0}', space=sflag, size = 0x4, scoped, tag = 'scoped memory for tpu_custom_call.1']
    %14 = vsyncpa [#allocation4], 0
    // Predicated region
    $region2: #{tpu_custom_call.1} parent=1 // pred_check
      _
    $region3: #{tpu_custom_call.1} parent=1 // pred_check_branch
      %16 = sbr.rel (0) target = $region5
    $region4: #{tpu_custom_call.1} parent=1 // pred_region
      _
    $region5: #{tpu_custom_call.1} parent=1 // pred_fallthru
      _
    // Predicated region
    $region6: #{tpu_custom_call.1} parent=1 // pred_check
      _
    $region7: #{tpu_custom_call.1} parent=1 // pred_check_branch
      %18 = sbr.rel (0) target = $region9
    $region8: #{tpu_custom_call.1} parent=1 // pred_region
      _
    $region9: #{tpu_custom_call.1} parent=1 // pred_fallthru
      _
    // Predicated region
    $region10: #{tpu_custom_call.1} parent=1 // pred_check
      _
    $region11: #{tpu_custom_call.1} parent=1 // pred_check_branch
      %20 = sbr.rel (0) target = $region13
    $region12: #{tpu_custom_call.1} parent=1 // pred_region
      _
    $region13: #{tpu_custom_call.1} parent=1 // pred_fallthru
      _
    // Predicated region
    $region14: #{tpu_custom_call.1} parent=1 // pred_check
      _
    $region15: #{tpu_custom_call.1} parent=1 // pred_check_branch
      %22 = sbr.rel (0) target = $region17
    $region16: #{tpu_custom_call.1} parent=1 // pred_region
      %s24 = ssub.s32 2048, 2048
      %25 = vsyncadd [#allocation4], %s24
      %s26 = sshll.u32 [#allocation3], 4
      %s27 = int_to_ptr.vmem [resolvable:$true] %s26
      %32 = dma.hbm_to_vmem [thread:$0]  %s3, 2048, %s27, [#allocation4], 256, 256, 16
    $region17: #{tpu_custom_call.1} parent=1 // pred_fallthru
      _
    // Predicated region
    $region18: #{tpu_custom_call.1} parent=1 // pred_check
      _
    $region19: #{tpu_custom_call.1} parent=1 // pred_check_branch
      %34 = sbr.rel (0) target = $region21
    $region20: #{tpu_custom_call.1} parent=1 // pred_region
      _
    $region21: #{tpu_custom_call.1} parent=1 // pred_fallthru
      _
    // Predicated region
    $region22: #{tpu_custom_call.1} parent=1 // pred_check
      _
    $region23: #{tpu_custom_call.1} parent=1 // pred_check_branch
      %36 = sbr.rel (0) target = $region25
    $region24: #{tpu_custom_call.1} parent=1 // pred_region
      _
    $region25: #{tpu_custom_call.1} parent=1 // pred_fallthru
      _
    // Predicated region
    $region26: #{tpu_custom_call.1} parent=1 // pred_check
      _
    $region27: #{tpu_custom_call.1} parent=1 // pred_check_branch
      %38 = sbr.rel (0) target = $region29
    $region28: #{tpu_custom_call.1} parent=1 // pred_region
      _
    $region29: #{tpu_custom_call.1} parent=1 // pred_fallthru
      _
    // Predicated region
    $region30: #{tpu_custom_call.1} parent=1 // pred_check
      _
    $region31: #{tpu_custom_call.1} parent=1 // pred_check_branch
      %40 = sbr.rel (0) target = $region33
    $region32: #{tpu_custom_call.1} parent=1 // pred_region
      %41 = dma.done [#allocation4], 2048
    $region33: #{tpu_custom_call.1} parent=1 // pred_fallthru
      _
    %v42 = vld [vmem:[%s1] sm:$0x1]
    %v43 = vld [vmem:[%s2] sm:$0x1]
    %v44 = vld [vmem:[#allocation3] sm:$0xff]
    %v45 = vld [vmem:[#allocation3 + $0x8] sm:$0xff]
    %v46 = vld [vmem:[#allocation3 + $0x10] sm:$0xff]
    %v47 = vld [vmem:[#allocation3 + $0x18] sm:$0xff]
    %v48 = vld [vmem:[#allocation3 + $0x20] sm:$0xff]
    %v49 = vld [vmem:[#allocation3 + $0x28] sm:$0xff]
    %v50 = vld [vmem:[#allocation3 + $0x30] sm:$0xff]
    %v51 = vld [vmem:[#allocation3 + $0x38] sm:$0xff]
    %v52 = vld [vmem:[#allocation3 + $0x40] sm:$0xff]
    %v53 = vld [vmem:[#allocation3 + $0x48] sm:$0xff]
    %v54 = vld [vmem:[#allocation3 + $0x50] sm:$0xff]
    %v55 = vld [vmem:[#allocation3 + $0x58] sm:$0xff]
    %v56 = vld [vmem:[#allocation3 + $0x60] sm:$0xff]
    %v57 = vld [vmem:[#allocation3 + $0x68] sm:$0xff]
    %v58 = vld [vmem:[#allocation3 + $0x70] sm:$0xff]
    %v59 = vld [vmem:[#allocation3 + $0x78] sm:$0xff]
    %v60 = vld [vmem:[%s4] sm:$0x1]
    %v61 = vld [vmem:[%s0] sm:$0xff]
    %63 = vset.pattern.permute.xlu0 0
    %64 = vperm.xlu0 %63, %v61
    %v65 = vpop.permute.xlu0 %64
    %v68 = vlaneseq
    %v69 = vshrl.u32 %v68, 7
    %v70 = vsub.s32 0, %v69
    %v71 = vrot.slane %v42, %v70
    %v73 = vmul.f32 %v65, %v71
    %v75 = vlaneseq
    %v76 = vshrl.u32 %v75, 7
    %v77 = vsub.s32 0, %v76
    %v78 = vrot.slane %v43, %v77
    %v80 = vadd.f32 %v73, %v78
    %s81 = scalar_lea.vmem %s0, 8
    %v82 = vld [vmem:[%s81] sm:$0xff]
    %84 = vset.pattern.permute.xlu0 0
    %85 = vperm.xlu0 %84, %v82
    %v86 = vpop.permute.xlu0 %85
    %v88 = vmul.f32 %v86, %v71
    %v89 = vadd.f32 %v88, %v78
    %s90 = scalar_lea.vmem %s0, 16
    %v91 = vld [vmem:[%s90] sm:$0xff]
    %93 = vset.pattern.permute.xlu0 0
    %94 = vperm.xlu0 %93, %v91
    %v95 = vpop.permute.xlu0 %94
    %v97 = vmul.f32 %v95, %v71
    %v98 = vadd.f32 %v97, %v78
    %s99 = scalar_lea.vmem %s0, 24
    %v100 = vld [vmem:[%s99] sm:$0xff]
    %102 = vset.pattern.permute.xlu0 0
    %103 = vperm.xlu0 %102, %v100
    %v104 = vpop.permute.xlu0 %103
    %v106 = vmul.f32 %v104, %v71
    %v107 = vadd.f32 %v106, %v78
    %s108 = scalar_lea.vmem %s0, 32
    %v109 = vld [vmem:[%s108] sm:$0xff]
    %111 = vset.pattern.permute.xlu0 0
    %112 = vperm.xlu0 %111, %v109
    %v113 = vpop.permute.xlu0 %112
    %v115 = vmul.f32 %v113, %v71
    %v116 = vadd.f32 %v115, %v78
    %s117 = scalar_lea.vmem %s0, 40
    %v118 = vld [vmem:[%s117] sm:$0xff]
    %120 = vset.pattern.permute.xlu0 0
    %121 = vperm.xlu0 %120, %v118
    %v122 = vpop.permute.xlu0 %121
    %v124 = vmul.f32 %v122, %v71
    %v125 = vadd.f32 %v124, %v78
    %s126 = scalar_lea.vmem %s0, 48
    %v127 = vld [vmem:[%s126] sm:$0xff]
    %129 = vset.pattern.permute.xlu0 0
    %130 = vperm.xlu0 %129, %v127
    %v131 = vpop.permute.xlu0 %130
    %v133 = vmul.f32 %v131, %v71
    %v134 = vadd.f32 %v133, %v78
    %s135 = scalar_lea.vmem %s0, 56
    %v136 = vld [vmem:[%s135] sm:$0xff]
    %138 = vset.pattern.permute.xlu0 0
    %139 = vperm.xlu0 %138, %v136
    %v140 = vpop.permute.xlu0 %139
    %v142 = vmul.f32 %v140, %v71
    %v143 = vadd.f32 %v142, %v78
    %v144 = vxor.u32 %v80, 2147483648
    %v145 = vmul.f32 %v144, 1.442695
    %v146 = vpow.pop %v145
    %v147 = vadd.f32 %v146, 1.0
    %v148 = vrcp.pop %v147
    %v149 = vmul.f32 1.0, %v148
    %v150 = vtanh.pop %v80
    %v151 = vmul.f32 %v149, 0.0
    %153 = vrot.lane.b32.xlu0 %v150, 64
    %v154 = vpop.permute.xlu0 %153
    %v156 = vmul.f32 %v149, %v154
    %158 = vrot.lane.b32.xlu0 %v156, 32
    %v159 = vpop.permute.xlu0 %158
    %v161 = vadd.f32 %v151, %v159
    %v162 = vtanh.pop %v161
    %164 = vrot.lane.b32.xlu0 %v162, 64
    %v165 = vpop.permute.xlu0 %164
    %v167 = vmul.f32 %v149, %v165
    %169 = vrot.lane.b32.xlu0 %v167, 32
    %v170 = vpop.permute.xlu0 %169
    %vm172 = vcmask 261120
    %v173 = vsel %vm172, %v170, 0.0
    %vm174 = vcmask 523264
    %v176 = vsel %vm174, %v173, 0
    %178 = vmatprep.subr.mxu0 0.0
    %179 = vmatpush1.msra.mxu0 0.0
    %180 = vmatprep.subr.mxu0 0.0
    %181 = vmatpush1.msra.mxu0 0.0
    %182 = vmatprep.subr.mxu0 0.0
    %183 = vmatpush1.msra.mxu0 0.0
    %184 = vmatprep.subr.mxu0 0.0
    %185 = vmatpush1.msra.mxu0 0.0
    %186 = vmatprep.subr.mxu0 0.0
    %187 = vmatpush1.msra.mxu0 0.0
    %188 = vmatprep.subr.mxu0 0.0
    %189 = vmatpush1.msra.mxu0 0.0
    %190 = vmatprep.subr.mxu0 0.0
    %191 = vmatpush1.msra.mxu0 0.0
    %192 = vmatprep.subr.mxu0 0.0
    %193 = vmatpush1.msra.mxu0 0.0
    %194 = vmatprep.subr.mxu0 %v59
    %195 = vmatpush1.msra.mxu0 %v58
    %196 = vmatprep.subr.mxu0 %v57
    %197 = vmatpush1.msra.mxu0 %v56
    %198 = vmatprep.subr.mxu0 %v55
    %199 = vmatpush1.msra.mxu0 %v54
    %200 = vmatprep.subr.mxu0 %v53
    %201 = vmatpush1.msra.mxu0 %v52
    %202 = vmatprep.subr.mxu0 %v51
    %203 = vmatpush1.msra.mxu0 %v50
    %204 = vmatprep.subr.mxu0 %v49
    %205 = vmatpush1.msra.mxu0 %v48
    %206 = vmatprep.subr.mxu0 %v47
    %207 = vmatpush1.msra.mxu0 %v46
    %208 = vmatprep.subr.mxu0 %v45
    %209 = vmatpush1.msra.mxu0 %v44
    %210 = vmatprep.subr.mxu0 0.0
    %211 = vmatpush2.msra.mxu0 0.0
    %212 = vmatprep.subr.mxu0 0.0
    %213 = vmatpush2.msra.mxu0 0.0
    %214 = vmatprep.subr.mxu0 0.0
    %215 = vmatpush2.msra.mxu0 0.0
    %216 = vmatprep.subr.mxu0 0.0
    %217 = vmatpush2.msra.mxu0 0.0
    %218 = vmatprep.subr.mxu0 0.0
    %219 = vmatpush2.msra.mxu0 0.0
    %220 = vmatprep.subr.mxu0 0.0
    %221 = vmatpush2.msra.mxu0 0.0
    %222 = vmatprep.subr.mxu0 0.0
    %223 = vmatpush2.msra.mxu0 0.0
    %224 = vmatprep.subr.mxu0 0.0
    %225 = vmatpush2.msra.mxu0 0.0
    %226 = vmatprep.subr.mxu0 0.0
    %227 = vmatpush2.msra.mxu0 0.0
    %228 = vmatprep.subr.mxu0 0.0
    %229 = vmatpush2.msra.mxu0 0.0
    %230 = vmatprep.subr.mxu0 0.0
    %231 = vmatpush2.msra.mxu0 0.0
    %232 = vmatprep.subr.mxu0 0.0
    %233 = vmatpush2.msra.mxu0 0.0
    %234 = vmatprep.subr.mxu0 0.0
    %235 = vmatpush2.msra.mxu0 0.0
    %236 = vmatprep.subr.mxu0 0.0
    %237 = vmatpush2.msra.mxu0 0.0
    %238 = vmatprep.subr.mxu0 0.0
    %239 = vmatpush2.msra.mxu0 0.0
    %240 = vmatprep.subr.mxu0 0.0
    %241 = vmatpush2.msra.mxu0 0.0
    %242 = vmatprep.mubr.f32.mxu0 0.0
    %243 = vmatmul.mubr.f32.gmra.mxu0 %v176
    %v244 = vpop.f32.mrf.mxu0
    %v245 = vadd.f32 0.0, %v244
    %v246 = vpop.f32.mrf.mxu0
    %v247 = vadd.f32 0.0, %v246
    %248 = vdwg.mxu0
    %v250 = vlaneseq
    %v251 = vshrl.u32 %v250, 7
    %v252 = vsub.s32 0, %v251
    %v253 = vrot.slane %v60, %v252
    %v255 = vadd.f32 %v247, %v253
    %v256 = vxor.u32 %v255, 2147483648
    %v257 = vmul.f32 %v256, 1.442695
    %v258 = vpow.pop %v257
    %v259 = vadd.f32 %v258, 1.0
    %v260 = vrcp.pop %v259
    %v261 = vmul.f32 1.0, %v260
    %v262 = vtanh.pop %v255
    %v263 = vmul.f32 %v261, 0.0
    %265 = vrot.lane.b32.xlu0 %v262, 64
    %v266 = vpop.permute.xlu0 %265
    %v268 = vmul.f32 %v261, %v266
    %270 = vrot.lane.b32.xlu0 %v268, 32
    %v271 = vpop.permute.xlu0 %270
    %v273 = vadd.f32 %v263, %v271
    %v274 = vtanh.pop %v273
    %276 = vrot.lane.b32.xlu0 %v274, 64
    %v277 = vpop.permute.xlu0 %276
    %v279 = vmul.f32 %v261, %v277
    %v280 = vadd.f32 %v89, %v245
    %v281 = vxor.u32 %v280, 2147483648
    %v282 = vmul.f32 %v281, 1.442695
    %v283 = vpow.pop %v282
    %v284 = vadd.f32 %v283, 1.0
    %v285 = vrcp.pop %v284
    %v286 = vmul.f32 1.0, %v285
    %v287 = vtanh.pop %v280
    %v288 = vmul.f32 %v286, %v161
    %290 = vrot.lane.b32.xlu0 %v287, 64
    %v291 = vpop.permute.xlu0 %290
    %v293 = vmul.f32 %v286, %v291
    %295 = vrot.lane.b32.xlu0 %v293, 32
    %v296 = vpop.permute.xlu0 %295
    %v298 = vadd.f32 %v288, %v296
    %v299 = vtanh.pop %v298
    %301 = vrot.lane.b32.xlu0 %v299, 64
    %v302 = vpop.permute.xlu0 %301
    %v304 = vmul.f32 %v286, %v302
    %306 = vrot.lane.b32.xlu0 %v304, 32
    %v307 = vpop.permute.xlu0 %306
    %310 = vrot.lane.b32.xlu0 %v279, 64
    %v311 = vpop.permute.xlu0 %310
    %v313 = vsel %vm172, %v307, %v311
    %v315 = vsel %vm174, %v313, 0
    %317 = vmatprep.subr.mxu0 0.0
    %318 = vmatpush1.msra.mxu0 0.0
    %319 = vmatprep.subr.mxu0 0.0
    %320 = vmatpush1.msra.mxu0 0.0
    %321 = vmatprep.subr.mxu0 0.0
    %322 = vmatpush1.msra.mxu0 0.0
    %323 = vmatprep.subr.mxu0 0.0
    %324 = vmatpush1.msra.mxu0 0.0
    %325 = vmatprep.subr.mxu0 0.0
    %326 = vmatpush1.msra.mxu0 0.0
    %327 = vmatprep.subr.mxu0 0.0
    %328 = vmatpush1.msra.mxu0 0.0
    %329 = vmatprep.subr.mxu0 0.0
    %330 = vmatpush1.msra.mxu0 0.0
    %331 = vmatprep.subr.mxu0 0.0
    %332 = vmatpush1.msra.mxu0 0.0
    %333 = vmatprep.subr.mxu0 %v59
    %334 = vmatpush1.msra.mxu0 %v58
    %335 = vmatprep.subr.mxu0 %v57
    %336 = vmatpush1.msra.mxu0 %v56
    %337 = vmatprep.subr.mxu0 %v55
    %338 = vmatpush1.msra.mxu0 %v54
    %339 = vmatprep.subr.mxu0 %v53
    %340 = vmatpush1.msra.mxu0 %v52
    %341 = vmatprep.subr.mxu0 %v51
    %342 = vmatpush1.msra.mxu0 %v50
    %343 = vmatprep.subr.mxu0 %v49
    %344 = vmatpush1.msra.mxu0 %v48
    %345 = vmatprep.subr.mxu0 %v47
    %346 = vmatpush1.msra.mxu0 %v46
    %347 = vmatprep.subr.mxu0 %v45
    %348 = vmatpush1.msra.mxu0 %v44
    %349 = vmatprep.subr.mxu0 0.0
    %350 = vmatpush2.msra.mxu0 0.0
    %351 = vmatprep.subr.mxu0 0.0
    %352 = vmatpush2.msra.mxu0 0.0
    %353 = vmatprep.subr.mxu0 0.0
    %354 = vmatpush2.msra.mxu0 0.0
    %355 = vmatprep.subr.mxu0 0.0
    %356 = vmatpush2.msra.mxu0 0.0
    %357 = vmatprep.subr.mxu0 0.0
    %358 = vmatpush2.msra.mxu0 0.0
    %359 = vmatprep.subr.mxu0 0.0
    %360 = vmatpush2.msra.mxu0 0.0
    %361 = vmatprep.subr.mxu0 0.0
    %362 = vmatpush2.msra.mxu0 0.0
    %363 = vmatprep.subr.mxu0 0.0
    %364 = vmatpush2.msra.mxu0 0.0
    %365 = vmatprep.subr.mxu0 0.0
    %366 = vmatpush2.msra.mxu0 0.0
    %367 = vmatprep.subr.mxu0 0.0
    %368 = vmatpush2.msra.mxu0 0.0
    %369 = vmatprep.subr.mxu0 0.0
    %370 = vmatpush2.msra.mxu0 0.0
    %371 = vmatprep.subr.mxu0 0.0
    %372 = vmatpush2.msra.mxu0 0.0
    %373 = vmatprep.subr.mxu0 0.0
    %374 = vmatpush2.msra.mxu0 0.0
    %375 = vmatprep.subr.mxu0 0.0
    %376 = vmatpush2.msra.mxu0 0.0
    %377 = vmatprep.subr.mxu0 0.0
    %378 = vmatpush2.msra.mxu0 0.0
    %379 = vmatprep.subr.mxu0 0.0
    %380 = vmatpush2.msra.mxu0 0.0
    %381 = vmatprep.mubr.f32.mxu0 0.0
    %382 = vmatmul.mubr.f32.gmra.mxu0 %v315
    %v383 = vpop.f32.mrf.mxu0
    %v384 = vadd.f32 0.0, %v383
    %v385 = vpop.f32.mrf.mxu0
    %v386 = vadd.f32 0.0, %v385
    %387 = vdwg.mxu0
    %v388 = vadd.f32 %v386, %v253
    %v389 = vxor.u32 %v388, 2147483648
    %v390 = vmul.f32 %v389, 1.442695
    %v391 = vpow.pop %v390
    %v392 = vadd.f32 %v391, 1.0
    %v393 = vrcp.pop %v392
    %v394 = vmul.f32 1.0, %v393
    %v395 = vtanh.pop %v388
    %v396 = vmul.f32 %v394, %v273
    %398 = vrot.lane.b32.xlu0 %v395, 64
    %v399 = vpop.permute.xlu0 %398
    %v401 = vmul.f32 %v394, %v399
    %403 = vrot.lane.b32.xlu0 %v401, 32
    %v404 = vpop.permute.xlu0 %403
    %v406 = vadd.f32 %v396, %v404
    %v407 = vtanh.pop %v406
    %409 = vrot.lane.b32.xlu0 %v407, 64
    %v410 = vpop.permute.xlu0 %409
    %v412 = vmul.f32 %v394, %v410
    %v413 = vadd.f32 %v98, %v384
    %v414 = vxor.u32 %v413, 2147483648
    %v415 = vmul.f32 %v414, 1.442695
    %v416 = vpow.pop %v415
    %v417 = vadd.f32 %v416, 1.0
    %v418 = vrcp.pop %v417
    %v419 = vmul.f32 1.0, %v418
    %v420 = vtanh.pop %v413
    %v421 = vmul.f32 %v419, %v298
    %423 = vrot.lane.b32.xlu0 %v420, 64
    %v424 = vpop.permute.xlu0 %423
    %v426 = vmul.f32 %v419, %v424
    %428 = vrot.lane.b32.xlu0 %v426, 32
    %v429 = vpop.permute.xlu0 %428
    %v431 = vadd.f32 %v421, %v429
    %v432 = vtanh.pop %v431
    %434 = vrot.lane.b32.xlu0 %v432, 64
    %v435 = vpop.permute.xlu0 %434
    %v437 = vmul.f32 %v419, %v435
    %439 = vrot.lane.b32.xlu0 %v437, 32
    %v440 = vpop.permute.xlu0 %439
    %443 = vrot.lane.b32.xlu0 %v412, 64
    %v444 = vpop.permute.xlu0 %443
    %v446 = vsel %vm172, %v440, %v444
    %v448 = vsel %vm174, %v446, 0
    %450 = vmatprep.subr.mxu0 0.0
    %451 = vmatpush1.msra.mxu0 0.0
    %452 = vmatprep.subr.mxu0 0.0
    %453 = vmatpush1.msra.mxu0 0.0
    %454 = vmatprep.subr.mxu0 0.0
    %455 = vmatpush1.msra.mxu0 0.0
    %456 = vmatprep.subr.mxu0 0.0
    %457 = vmatpush1.msra.mxu0 0.0
    %458 = vmatprep.subr.mxu0 0.0
    %459 = vmatpush1.msra.mxu0 0.0
    %460 = vmatprep.subr.mxu0 0.0
    %461 = vmatpush1.msra.mxu0 0.0
    %462 = vmatprep.subr.mxu0 0.0
    %463 = vmatpush1.msra.mxu0 0.0
    %464 = vmatprep.subr.mxu0 0.0
    %465 = vmatpush1.msra.mxu0 0.0
    %466 = vmatprep.subr.mxu0 %v59
    %467 = vmatpush1.msra.mxu0 %v58
    %468 = vmatprep.subr.mxu0 %v57
    %469 = vmatpush1.msra.mxu0 %v56
    %470 = vmatprep.subr.mxu0 %v55
    %471 = vmatpush1.msra.mxu0 %v54
    %472 = vmatprep.subr.mxu0 %v53
    %473 = vmatpush1.msra.mxu0 %v52
    %474 = vmatprep.subr.mxu0 %v51
    %475 = vmatpush1.msra.mxu0 %v50
    %476 = vmatprep.subr.mxu0 %v49
    %477 = vmatpush1.msra.mxu0 %v48
    %478 = vmatprep.subr.mxu0 %v47
    %479 = vmatpush1.msra.mxu0 %v46
    %480 = vmatprep.subr.mxu0 %v45
    %481 = vmatpush1.msra.mxu0 %v44
    %482 = vmatprep.subr.mxu0 0.0
    %483 = vmatpush2.msra.mxu0 0.0
    %484 = vmatprep.subr.mxu0 0.0
    %485 = vmatpush2.msra.mxu0 0.0
    %486 = vmatprep.subr.mxu0 0.0
    %487 = vmatpush2.msra.mxu0 0.0
    %488 = vmatprep.subr.mxu0 0.0
    %489 = vmatpush2.msra.mxu0 0.0
    %490 = vmatprep.subr.mxu0 0.0
    %491 = vmatpush2.msra.mxu0 0.0
    %492 = vmatprep.subr.mxu0 0.0
    %493 = vmatpush2.msra.mxu0 0.0
    %494 = vmatprep.subr.mxu0 0.0
    %495 = vmatpush2.msra.mxu0 0.0
    %496 = vmatprep.subr.mxu0 0.0
    %497 = vmatpush2.msra.mxu0 0.0
    %498 = vmatprep.subr.mxu0 0.0
    %499 = vmatpush2.msra.mxu0 0.0
    %500 = vmatprep.subr.mxu0 0.0
    %501 = vmatpush2.msra.mxu0 0.0
    %502 = vmatprep.subr.mxu0 0.0
    %503 = vmatpush2.msra.mxu0 0.0
    %504 = vmatprep.subr.mxu0 0.0
    %505 = vmatpush2.msra.mxu0 0.0
    %506 = vmatprep.subr.mxu0 0.0
    %507 = vmatpush2.msra.mxu0 0.0
    %508 = vmatprep.subr.mxu0 0.0
    %509 = vmatpush2.msra.mxu0 0.0
    %510 = vmatprep.subr.mxu0 0.0
    %511 = vmatpush2.msra.mxu0 0.0
    %512 = vmatprep.subr.mxu0 0.0
    %513 = vmatpush2.msra.mxu0 0.0
    %514 = vmatprep.mubr.f32.mxu0 0.0
    %515 = vmatmul.mubr.f32.gmra.mxu0 %v448
    %v516 = vpop.f32.mrf.mxu0
    %v517 = vadd.f32 0.0, %v516
    %v518 = vpop.f32.mrf.mxu0
    %v519 = vadd.f32 0.0, %v518
    %520 = vdwg.mxu0
    %v521 = vadd.f32 %v519, %v253
    %v522 = vxor.u32 %v521, 2147483648
    %v523 = vmul.f32 %v522, 1.442695
    %v524 = vpow.pop %v523
    %v525 = vadd.f32 %v524, 1.0
    %v526 = vrcp.pop %v525
    %v527 = vmul.f32 1.0, %v526
    %v528 = vtanh.pop %v521
    %v529 = vmul.f32 %v527, %v406
    %531 = vrot.lane.b32.xlu0 %v528, 64
    %v532 = vpop.permute.xlu0 %531
    %v534 = vmul.f32 %v527, %v532
    %536 = vrot.lane.b32.xlu0 %v534, 32
    %v537 = vpop.permute.xlu0 %536
    %v539 = vadd.f32 %v529, %v537
    %v540 = vtanh.pop %v539
    %542 = vrot.lane.b32.xlu0 %v540, 64
    %v543 = vpop.permute.xlu0 %542
    %v545 = vmul.f32 %v527, %v543
    %v546 = vadd.f32 %v107, %v517
    %v547 = vxor.u32 %v546, 2147483648
    %v548 = vmul.f32 %v547, 1.442695
    %v549 = vpow.pop %v548
    %v550 = vadd.f32 %v549, 1.0
    %v551 = vrcp.pop %v550
    %v552 = vmul.f32 1.0, %v551
    %v553 = vtanh.pop %v546
    %v554 = vmul.f32 %v552, %v431
    %556 = vrot.lane.b32.xlu0 %v553, 64
    %v557 = vpop.permute.xlu0 %556
    %v559 = vmul.f32 %v552, %v557
    %561 = vrot.lane.b32.xlu0 %v559, 32
    %v562 = vpop.permute.xlu0 %561
    %v564 = vadd.f32 %v554, %v562
    %v565 = vtanh.pop %v564
    %567 = vrot.lane.b32.xlu0 %v565, 64
    %v568 = vpop.permute.xlu0 %567
    %v570 = vmul.f32 %v552, %v568
    %572 = vrot.lane.b32.xlu0 %v570, 32
    %v573 = vpop.permute.xlu0 %572
    %576 = vrot.lane.b32.xlu0 %v545, 64
    %v577 = vpop.permute.xlu0 %576
    %v579 = vsel %vm172, %v573, %v577
    %v581 = vsel %vm174, %v579, 0
    %583 = vmatprep.subr.mxu0 0.0
    %584 = vmatpush1.msra.mxu0 0.0
    %585 = vmatprep.subr.mxu0 0.0
    %586 = vmatpush1.msra.mxu0 0.0
    %587 = vmatprep.subr.mxu0 0.0
    %588 = vmatpush1.msra.mxu0 0.0
    %589 = vmatprep.subr.mxu0 0.0
    %590 = vmatpush1.msra.mxu0 0.0
    %591 = vmatprep.subr.mxu0 0.0
    %592 = vmatpush1.msra.mxu0 0.0
    %593 = vmatprep.subr.mxu0 0.0
    %594 = vmatpush1.msra.mxu0 0.0
    %595 = vmatprep.subr.mxu0 0.0
    %596 = vmatpush1.msra.mxu0 0.0
    %597 = vmatprep.subr.mxu0 0.0
    %598 = vmatpush1.msra.mxu0 0.0
    %599 = vmatprep.subr.mxu0 %v59
    %600 = vmatpush1.msra.mxu0 %v58
    %601 = vmatprep.subr.mxu0 %v57
    %602 = vmatpush1.msra.mxu0 %v56
    %603 = vmatprep.subr.mxu0 %v55
    %604 = vmatpush1.msra.mxu0 %v54
    %605 = vmatprep.subr.mxu0 %v53
    %606 = vmatpush1.msra.mxu0 %v52
    %607 = vmatprep.subr.mxu0 %v51
    %608 = vmatpush1.msra.mxu0 %v50
    %609 = vmatprep.subr.mxu0 %v49
    %610 = vmatpush1.msra.mxu0 %v48
    %611 = vmatprep.subr.mxu0 %v47
    %612 = vmatpush1.msra.mxu0 %v46
    %613 = vmatprep.subr.mxu0 %v45
    %614 = vmatpush1.msra.mxu0 %v44
    %615 = vmatprep.subr.mxu0 0.0
    %616 = vmatpush2.msra.mxu0 0.0
    %617 = vmatprep.subr.mxu0 0.0
    %618 = vmatpush2.msra.mxu0 0.0
    %619 = vmatprep.subr.mxu0 0.0
    %620 = vmatpush2.msra.mxu0 0.0
    %621 = vmatprep.subr.mxu0 0.0
    %622 = vmatpush2.msra.mxu0 0.0
    %623 = vmatprep.subr.mxu0 0.0
    %624 = vmatpush2.msra.mxu0 0.0
    %625 = vmatprep.subr.mxu0 0.0
    %626 = vmatpush2.msra.mxu0 0.0
    %627 = vmatprep.subr.mxu0 0.0
    %628 = vmatpush2.msra.mxu0 0.0
    %629 = vmatprep.subr.mxu0 0.0
    %630 = vmatpush2.msra.mxu0 0.0
    %631 = vmatprep.subr.mxu0 0.0
    %632 = vmatpush2.msra.mxu0 0.0
    %633 = vmatprep.subr.mxu0 0.0
    %634 = vmatpush2.msra.mxu0 0.0
    %635 = vmatprep.subr.mxu0 0.0
    %636 = vmatpush2.msra.mxu0 0.0
    %637 = vmatprep.subr.mxu0 0.0
    %638 = vmatpush2.msra.mxu0 0.0
    %639 = vmatprep.subr.mxu0 0.0
    %640 = vmatpush2.msra.mxu0 0.0
    %641 = vmatprep.subr.mxu0 0.0
    %642 = vmatpush2.msra.mxu0 0.0
    %643 = vmatprep.subr.mxu0 0.0
    %644 = vmatpush2.msra.mxu0 0.0
    %645 = vmatprep.subr.mxu0 0.0
    %646 = vmatpush2.msra.mxu0 0.0
    %647 = vmatprep.mubr.f32.mxu0 0.0
    %648 = vmatmul.mubr.f32.gmra.mxu0 %v581
    %v649 = vpop.f32.mrf.mxu0
    %v650 = vadd.f32 0.0, %v649
    %v651 = vpop.f32.mrf.mxu0
    %v652 = vadd.f32 0.0, %v651
    %653 = vdwg.mxu0
    %v654 = vadd.f32 %v652, %v253
    %v655 = vxor.u32 %v654, 2147483648
    %v656 = vmul.f32 %v655, 1.442695
    %v657 = vpow.pop %v656
    %v658 = vadd.f32 %v657, 1.0
    %v659 = vrcp.pop %v658
    %v660 = vmul.f32 1.0, %v659
    %v661 = vtanh.pop %v654
    %v662 = vmul.f32 %v660, %v539
    %664 = vrot.lane.b32.xlu0 %v661, 64
    %v665 = vpop.permute.xlu0 %664
    %v667 = vmul.f32 %v660, %v665
    %669 = vrot.lane.b32.xlu0 %v667, 32
    %v670 = vpop.permute.xlu0 %669
    %v672 = vadd.f32 %v662, %v670
    %v673 = vtanh.pop %v672
    %675 = vrot.lane.b32.xlu0 %v673, 64
    %v676 = vpop.permute.xlu0 %675
    %v678 = vmul.f32 %v660, %v676
    %v679 = vadd.f32 %v116, %v650
    %v680 = vxor.u32 %v679, 2147483648
    %v681 = vmul.f32 %v680, 1.442695
    %v682 = vpow.pop %v681
    %v683 = vadd.f32 %v682, 1.0
    %v684 = vrcp.pop %v683
    %v685 = vmul.f32 1.0, %v684
    %v686 = vtanh.pop %v679
    %v687 = vmul.f32 %v685, %v564
    %689 = vrot.lane.b32.xlu0 %v686, 64
    %v690 = vpop.permute.xlu0 %689
    %v692 = vmul.f32 %v685, %v690
    %694 = vrot.lane.b32.xlu0 %v692, 32
    %v695 = vpop.permute.xlu0 %694
    %v697 = vadd.f32 %v687, %v695
    %v698 = vtanh.pop %v697
    %700 = vrot.lane.b32.xlu0 %v698, 64
    %v701 = vpop.permute.xlu0 %700
    %v703 = vmul.f32 %v685, %v701
    %705 = vrot.lane.b32.xlu0 %v703, 32
    %v706 = vpop.permute.xlu0 %705
    %709 = vrot.lane.b32.xlu0 %v678, 64
    %v710 = vpop.permute.xlu0 %709
    %v712 = vsel %vm172, %v706, %v710
    %v714 = vsel %vm174, %v712, 0
    %716 = vmatprep.subr.mxu0 0.0
    %717 = vmatpush1.msra.mxu0 0.0
    %718 = vmatprep.subr.mxu0 0.0
    %719 = vmatpush1.msra.mxu0 0.0
    %720 = vmatprep.subr.mxu0 0.0
    %721 = vmatpush1.msra.mxu0 0.0
    %722 = vmatprep.subr.mxu0 0.0
    %723 = vmatpush1.msra.mxu0 0.0
    %724 = vmatprep.subr.mxu0 0.0
    %725 = vmatpush1.msra.mxu0 0.0
    %726 = vmatprep.subr.mxu0 0.0
    %727 = vmatpush1.msra.mxu0 0.0
    %728 = vmatprep.subr.mxu0 0.0
    %729 = vmatpush1.msra.mxu0 0.0
    %730 = vmatprep.subr.mxu0 0.0
    %731 = vmatpush1.msra.mxu0 0.0
    %732 = vmatprep.subr.mxu0 %v59
    %733 = vmatpush1.msra.mxu0 %v58
    %734 = vmatprep.subr.mxu0 %v57
    %735 = vmatpush1.msra.mxu0 %v56
    %736 = vmatprep.subr.mxu0 %v55
    %737 = vmatpush1.msra.mxu0 %v54
    %738 = vmatprep.subr.mxu0 %v53
    %739 = vmatpush1.msra.mxu0 %v52
    %740 = vmatprep.subr.mxu0 %v51
    %741 = vmatpush1.msra.mxu0 %v50
    %742 = vmatprep.subr.mxu0 %v49
    %743 = vmatpush1.msra.mxu0 %v48
    %744 = vmatprep.subr.mxu0 %v47
    %745 = vmatpush1.msra.mxu0 %v46
    %746 = vmatprep.subr.mxu0 %v45
    %747 = vmatpush1.msra.mxu0 %v44
    %748 = vmatprep.subr.mxu0 0.0
    %749 = vmatpush2.msra.mxu0 0.0
    %750 = vmatprep.subr.mxu0 0.0
    %751 = vmatpush2.msra.mxu0 0.0
    %752 = vmatprep.subr.mxu0 0.0
    %753 = vmatpush2.msra.mxu0 0.0
    %754 = vmatprep.subr.mxu0 0.0
    %755 = vmatpush2.msra.mxu0 0.0
    %756 = vmatprep.subr.mxu0 0.0
    %757 = vmatpush2.msra.mxu0 0.0
    %758 = vmatprep.subr.mxu0 0.0
    %759 = vmatpush2.msra.mxu0 0.0
    %760 = vmatprep.subr.mxu0 0.0
    %761 = vmatpush2.msra.mxu0 0.0
    %762 = vmatprep.subr.mxu0 0.0
    %763 = vmatpush2.msra.mxu0 0.0
    %764 = vmatprep.subr.mxu0 0.0
    %765 = vmatpush2.msra.mxu0 0.0
    %766 = vmatprep.subr.mxu0 0.0
    %767 = vmatpush2.msra.mxu0 0.0
    %768 = vmatprep.subr.mxu0 0.0
    %769 = vmatpush2.msra.mxu0 0.0
    %770 = vmatprep.subr.mxu0 0.0
    %771 = vmatpush2.msra.mxu0 0.0
    %772 = vmatprep.subr.mxu0 0.0
    %773 = vmatpush2.msra.mxu0 0.0
    %774 = vmatprep.subr.mxu0 0.0
    %775 = vmatpush2.msra.mxu0 0.0
    %776 = vmatprep.subr.mxu0 0.0
    %777 = vmatpush2.msra.mxu0 0.0
    %778 = vmatprep.subr.mxu0 0.0
    %779 = vmatpush2.msra.mxu0 0.0
    %780 = vmatprep.mubr.f32.mxu0 0.0
    %781 = vmatmul.mubr.f32.gmra.mxu0 %v714
    %v782 = vpop.f32.mrf.mxu0
    %v783 = vadd.f32 0.0, %v782
    %v784 = vpop.f32.mrf.mxu0
    %v785 = vadd.f32 0.0, %v784
    %786 = vdwg.mxu0
    %v787 = vadd.f32 %v785, %v253
    %v788 = vxor.u32 %v787, 2147483648
    %v789 = vmul.f32 %v788, 1.442695
    %v790 = vpow.pop %v789
    %v791 = vadd.f32 %v790, 1.0
    %v792 = vrcp.pop %v791
    %v793 = vmul.f32 1.0, %v792
    %v794 = vtanh.pop %v787
    %v795 = vmul.f32 %v793, %v672
    %797 = vrot.lane.b32.xlu0 %v794, 64
    %v798 = vpop.permute.xlu0 %797
    %v800 = vmul.f32 %v793, %v798
    %802 = vrot.lane.b32.xlu0 %v800, 32
    %v803 = vpop.permute.xlu0 %802
    %v805 = vadd.f32 %v795, %v803
    %v806 = vtanh.pop %v805
    %808 = vrot.lane.b32.xlu0 %v806, 64
    %v809 = vpop.permute.xlu0 %808
    %v811 = vmul.f32 %v793, %v809
    %v812 = vadd.f32 %v125, %v783
    %v813 = vxor.u32 %v812, 2147483648
    %v814 = vmul.f32 %v813, 1.442695
    %v815 = vpow.pop %v814
    %v816 = vadd.f32 %v815, 1.0
    %v817 = vrcp.pop %v816
    %v818 = vmul.f32 1.0, %v817
    %v819 = vtanh.pop %v812
    %v820 = vmul.f32 %v818, %v697
    %822 = vrot.lane.b32.xlu0 %v819, 64
    %v823 = vpop.permute.xlu0 %822
    %v825 = vmul.f32 %v818, %v823
    %827 = vrot.lane.b32.xlu0 %v825, 32
    %v828 = vpop.permute.xlu0 %827
    %v830 = vadd.f32 %v820, %v828
    %v831 = vtanh.pop %v830
    %833 = vrot.lane.b32.xlu0 %v831, 64
    %v834 = vpop.permute.xlu0 %833
    %v836 = vmul.f32 %v818, %v834
    %838 = vrot.lane.b32.xlu0 %v836, 32
    %v839 = vpop.permute.xlu0 %838
    %842 = vrot.lane.b32.xlu0 %v811, 64
    %v843 = vpop.permute.xlu0 %842
    %v845 = vsel %vm172, %v839, %v843
    %v847 = vsel %vm174, %v845, 0
    %849 = vmatprep.subr.mxu0 0.0
    %850 = vmatpush1.msra.mxu0 0.0
    %851 = vmatprep.subr.mxu0 0.0
    %852 = vmatpush1.msra.mxu0 0.0
    %853 = vmatprep.subr.mxu0 0.0
    %854 = vmatpush1.msra.mxu0 0.0
    %855 = vmatprep.subr.mxu0 0.0
    %856 = vmatpush1.msra.mxu0 0.0
    %857 = vmatprep.subr.mxu0 0.0
    %858 = vmatpush1.msra.mxu0 0.0
    %859 = vmatprep.subr.mxu0 0.0
    %860 = vmatpush1.msra.mxu0 0.0
    %861 = vmatprep.subr.mxu0 0.0
    %862 = vmatpush1.msra.mxu0 0.0
    %863 = vmatprep.subr.mxu0 0.0
    %864 = vmatpush1.msra.mxu0 0.0
    %865 = vmatprep.subr.mxu0 %v59
    %866 = vmatpush1.msra.mxu0 %v58
    %867 = vmatprep.subr.mxu0 %v57
    %868 = vmatpush1.msra.mxu0 %v56
    %869 = vmatprep.subr.mxu0 %v55
    %870 = vmatpush1.msra.mxu0 %v54
    %871 = vmatprep.subr.mxu0 %v53
    %872 = vmatpush1.msra.mxu0 %v52
    %873 = vmatprep.subr.mxu0 %v51
    %874 = vmatpush1.msra.mxu0 %v50
    %875 = vmatprep.subr.mxu0 %v49
    %876 = vmatpush1.msra.mxu0 %v48
    %877 = vmatprep.subr.mxu0 %v47
    %878 = vmatpush1.msra.mxu0 %v46
    %879 = vmatprep.subr.mxu0 %v45
    %880 = vmatpush1.msra.mxu0 %v44
    %881 = vmatprep.subr.mxu0 0.0
    %882 = vmatpush2.msra.mxu0 0.0
    %883 = vmatprep.subr.mxu0 0.0
    %884 = vmatpush2.msra.mxu0 0.0
    %885 = vmatprep.subr.mxu0 0.0
    %886 = vmatpush2.msra.mxu0 0.0
    %887 = vmatprep.subr.mxu0 0.0
    %888 = vmatpush2.msra.mxu0 0.0
    %889 = vmatprep.subr.mxu0 0.0
    %890 = vmatpush2.msra.mxu0 0.0
    %891 = vmatprep.subr.mxu0 0.0
    %892 = vmatpush2.msra.mxu0 0.0
    %893 = vmatprep.subr.mxu0 0.0
    %894 = vmatpush2.msra.mxu0 0.0
    %895 = vmatprep.subr.mxu0 0.0
    %896 = vmatpush2.msra.mxu0 0.0
    %897 = vmatprep.subr.mxu0 0.0
    %898 = vmatpush2.msra.mxu0 0.0
    %899 = vmatprep.subr.mxu0 0.0
    %900 = vmatpush2.msra.mxu0 0.0
    %901 = vmatprep.subr.mxu0 0.0
    %902 = vmatpush2.msra.mxu0 0.0
    %903 = vmatprep.subr.mxu0 0.0
    %904 = vmatpush2.msra.mxu0 0.0
    %905 = vmatprep.subr.mxu0 0.0
    %906 = vmatpush2.msra.mxu0 0.0
    %907 = vmatprep.subr.mxu0 0.0
    %908 = vmatpush2.msra.mxu0 0.0
    %909 = vmatprep.subr.mxu0 0.0
    %910 = vmatpush2.msra.mxu0 0.0
    %911 = vmatprep.subr.mxu0 0.0
    %912 = vmatpush2.msra.mxu0 0.0
    %913 = vmatprep.mubr.f32.mxu0 0.0
    %914 = vmatmul.mubr.f32.gmra.mxu0 %v847
    %v915 = vpop.f32.mrf.mxu0
    %v916 = vadd.f32 0.0, %v915
    %v917 = vpop.f32.mrf.mxu0
    %v918 = vadd.f32 0.0, %v917
    %919 = vdwg.mxu0
    %v920 = vadd.f32 %v918, %v253
    %v921 = vxor.u32 %v920, 2147483648
    %v922 = vmul.f32 %v921, 1.442695
    %v923 = vpow.pop %v922
    %v924 = vadd.f32 %v923, 1.0
    %v925 = vrcp.pop %v924
    %v926 = vmul.f32 1.0, %v925
    %v927 = vtanh.pop %v920
    %v928 = vmul.f32 %v926, %v805
    %930 = vrot.lane.b32.xlu0 %v927, 64
    %v931 = vpop.permute.xlu0 %930
    %v933 = vmul.f32 %v926, %v931
    %935 = vrot.lane.b32.xlu0 %v933, 32
    %v936 = vpop.permute.xlu0 %935
    %v938 = vadd.f32 %v928, %v936
    %v939 = vtanh.pop %v938
    %941 = vrot.lane.b32.xlu0 %v939, 64
    %v942 = vpop.permute.xlu0 %941
    %v944 = vmul.f32 %v926, %v942
    %v945 = vadd.f32 %v134, %v916
    %v946 = vxor.u32 %v945, 2147483648
    %v947 = vmul.f32 %v946, 1.442695
    %v948 = vpow.pop %v947
    %v949 = vadd.f32 %v948, 1.0
    %v950 = vrcp.pop %v949
    %v951 = vmul.f32 1.0, %v950
    %v952 = vtanh.pop %v945
    %v953 = vmul.f32 %v951, %v830
    %955 = vrot.lane.b32.xlu0 %v952, 64
    %v956 = vpop.permute.xlu0 %955
    %v958 = vmul.f32 %v951, %v956
    %960 = vrot.lane.b32.xlu0 %v958, 32
    %v961 = vpop.permute.xlu0 %960
    %v963 = vadd.f32 %v953, %v961
    %v964 = vtanh.pop %v963
    %966 = vrot.lane.b32.xlu0 %v964, 64
    %v967 = vpop.permute.xlu0 %966
    %v969 = vmul.f32 %v951, %v967
    %971 = vrot.lane.b32.xlu0 %v969, 32
    %v972 = vpop.permute.xlu0 %971
    %975 = vrot.lane.b32.xlu0 %v944, 64
    %v976 = vpop.permute.xlu0 %975
    %v978 = vsel %vm172, %v972, %v976
    %v980 = vsel %vm174, %v978, 0
    %982 = vmatprep.subr.mxu0 0.0
    %983 = vmatpush1.msra.mxu0 0.0
    %984 = vmatprep.subr.mxu0 0.0
    %985 = vmatpush1.msra.mxu0 0.0
    %986 = vmatprep.subr.mxu0 0.0
    %987 = vmatpush1.msra.mxu0 0.0
    %988 = vmatprep.subr.mxu0 0.0
    %989 = vmatpush1.msra.mxu0 0.0
    %990 = vmatprep.subr.mxu0 0.0
    %991 = vmatpush1.msra.mxu0 0.0
    %992 = vmatprep.subr.mxu0 0.0
    %993 = vmatpush1.msra.mxu0 0.0
    %994 = vmatprep.subr.mxu0 0.0
    %995 = vmatpush1.msra.mxu0 0.0
    %996 = vmatprep.subr.mxu0 0.0
    %997 = vmatpush1.msra.mxu0 0.0
    %998 = vmatprep.subr.mxu0 %v59
    %999 = vmatpush1.msra.mxu0 %v58
    %1000 = vmatprep.subr.mxu0 %v57
    %1001 = vmatpush1.msra.mxu0 %v56
    %1002 = vmatprep.subr.mxu0 %v55
    %1003 = vmatpush1.msra.mxu0 %v54
    %1004 = vmatprep.subr.mxu0 %v53
    %1005 = vmatpush1.msra.mxu0 %v52
    %1006 = vmatprep.subr.mxu0 %v51
    %1007 = vmatpush1.msra.mxu0 %v50
    %1008 = vmatprep.subr.mxu0 %v49
    %1009 = vmatpush1.msra.mxu0 %v48
    %1010 = vmatprep.subr.mxu0 %v47
    %1011 = vmatpush1.msra.mxu0 %v46
    %1012 = vmatprep.subr.mxu0 %v45
    %1013 = vmatpush1.msra.mxu0 %v44
    %1014 = vmatprep.subr.mxu0 0.0
    %1015 = vmatpush2.msra.mxu0 0.0
    %1016 = vmatprep.subr.mxu0 0.0
    %1017 = vmatpush2.msra.mxu0 0.0
    %1018 = vmatprep.subr.mxu0 0.0
    %1019 = vmatpush2.msra.mxu0 0.0
    %1020 = vmatprep.subr.mxu0 0.0
    %1021 = vmatpush2.msra.mxu0 0.0
    %1022 = vmatprep.subr.mxu0 0.0
    %1023 = vmatpush2.msra.mxu0 0.0
    %1024 = vmatprep.subr.mxu0 0.0
    %1025 = vmatpush2.msra.mxu0 0.0
    %1026 = vmatprep.subr.mxu0 0.0
    %1027 = vmatpush2.msra.mxu0 0.0
    %1028 = vmatprep.subr.mxu0 0.0
    %1029 = vmatpush2.msra.mxu0 0.0
    %1030 = vmatprep.subr.mxu0 0.0
    %1031 = vmatpush2.msra.mxu0 0.0
    %1032 = vmatprep.subr.mxu0 0.0
    %1033 = vmatpush2.msra.mxu0 0.0
    %1034 = vmatprep.subr.mxu0 0.0
    %1035 = vmatpush2.msra.mxu0 0.0
    %1036 = vmatprep.subr.mxu0 0.0
    %1037 = vmatpush2.msra.mxu0 0.0
    %1038 = vmatprep.subr.mxu0 0.0
    %1039 = vmatpush2.msra.mxu0 0.0
    %1040 = vmatprep.subr.mxu0 0.0
    %1041 = vmatpush2.msra.mxu0 0.0
    %1042 = vmatprep.subr.mxu0 0.0
    %1043 = vmatpush2.msra.mxu0 0.0
    %1044 = vmatprep.subr.mxu0 0.0
    %1045 = vmatpush2.msra.mxu0 0.0
    %1046 = vmatprep.mubr.f32.mxu0 0.0
    %1047 = vmatmul.mubr.f32.gmra.mxu0 %v980
    %v1048 = vpop.f32.mrf.mxu0
    %v1049 = vadd.f32 0.0, %v1048
    %v1050 = vpop.f32.mrf.mxu0
    %v1051 = vadd.f32 0.0, %v1050
    %1052 = vdwg.mxu0
    %v1053 = vadd.f32 %v1051, %v253
    %v1054 = vxor.u32 %v1053, 2147483648
    %v1055 = vmul.f32 %v1054, 1.442695
    %v1056 = vpow.pop %v1055
    %v1057 = vadd.f32 %v1056, 1.0
    %v1058 = vrcp.pop %v1057
    %v1059 = vmul.f32 1.0, %v1058
    %v1060 = vtanh.pop %v1053
    %v1061 = vmul.f32 %v1059, %v938
    %1063 = vrot.lane.b32.xlu0 %v1060, 64
    %v1064 = vpop.permute.xlu0 %1063
    %v1066 = vmul.f32 %v1059, %v1064
    %1068 = vrot.lane.b32.xlu0 %v1066, 32
    %v1069 = vpop.permute.xlu0 %1068
    %v1071 = vadd.f32 %v1061, %v1069
    %v1072 = vtanh.pop %v1071
    %1074 = vrot.lane.b32.xlu0 %v1072, 64
    %v1075 = vpop.permute.xlu0 %1074
    %v1077 = vmul.f32 %v1059, %v1075
    %v1078 = vadd.f32 %v143, %v1049
    %v1079 = vxor.u32 %v1078, 2147483648
    %v1080 = vmul.f32 %v1079, 1.442695
    %v1081 = vpow.pop %v1080
    %v1082 = vadd.f32 %v1081, 1.0
    %v1083 = vrcp.pop %v1082
    %v1084 = vmul.f32 1.0, %v1083
    %v1085 = vtanh.pop %v1078
    %v1086 = vmul.f32 %v1084, %v963
    %1088 = vrot.lane.b32.xlu0 %v1085, 64
    %v1089 = vpop.permute.xlu0 %1088
    %v1091 = vmul.f32 %v1084, %v1089
    %1093 = vrot.lane.b32.xlu0 %v1091, 32
    %v1094 = vpop.permute.xlu0 %1093
    %v1096 = vadd.f32 %v1086, %v1094
    %v1097 = vtanh.pop %v1096
    %1099 = vrot.lane.b32.xlu0 %v1097, 64
    %v1100 = vpop.permute.xlu0 %1099
    %v1102 = vmul.f32 %v1084, %v1100
    %1104 = vrot.lane.b32.xlu0 %v1102, 32
    %v1105 = vpop.permute.xlu0 %1104
    %1108 = vrot.lane.b32.xlu0 %v1077, 64
    %v1109 = vpop.permute.xlu0 %1108
    %v1111 = vsel %vm172, %v1105, %v1109
    %v1113 = vsel %vm174, %v1111, 0
    %1115 = vmatprep.subr.mxu0 0.0
    %1116 = vmatpush1.msra.mxu0 0.0
    %1117 = vmatprep.subr.mxu0 0.0
    %1118 = vmatpush1.msra.mxu0 0.0
    %1119 = vmatprep.subr.mxu0 0.0
    %1120 = vmatpush1.msra.mxu0 0.0
    %1121 = vmatprep.subr.mxu0 0.0
    %1122 = vmatpush1.msra.mxu0 0.0
    %1123 = vmatprep.subr.mxu0 0.0
    %1124 = vmatpush1.msra.mxu0 0.0
    %1125 = vmatprep.subr.mxu0 0.0
    %1126 = vmatpush1.msra.mxu0 0.0
    %1127 = vmatprep.subr.mxu0 0.0
    %1128 = vmatpush1.msra.mxu0 0.0
    %1129 = vmatprep.subr.mxu0 0.0
    %1130 = vmatpush1.msra.mxu0 0.0
    %1131 = vmatprep.subr.mxu0 %v59
    %1132 = vmatpush1.msra.mxu0 %v58
    %1133 = vmatprep.subr.mxu0 %v57
    %1134 = vmatpush1.msra.mxu0 %v56
    %1135 = vmatprep.subr.mxu0 %v55
    %1136 = vmatpush1.msra.mxu0 %v54
    %1137 = vmatprep.subr.mxu0 %v53
    %1138 = vmatpush1.msra.mxu0 %v52
    %1139 = vmatprep.subr.mxu0 %v51
    %1140 = vmatpush1.msra.mxu0 %v50
    %1141 = vmatprep.subr.mxu0 %v49
    %1142 = vmatpush1.msra.mxu0 %v48
    %1143 = vmatprep.subr.mxu0 %v47
    %1144 = vmatpush1.msra.mxu0 %v46
    %1145 = vmatprep.subr.mxu0 %v45
    %1146 = vmatpush1.msra.mxu0 %v44
    %1147 = vmatprep.subr.mxu0 0.0
    %1148 = vmatpush2.msra.mxu0 0.0
    %1149 = vmatprep.subr.mxu0 0.0
    %1150 = vmatpush2.msra.mxu0 0.0
    %1151 = vmatprep.subr.mxu0 0.0
    %1152 = vmatpush2.msra.mxu0 0.0
    %1153 = vmatprep.subr.mxu0 0.0
    %1154 = vmatpush2.msra.mxu0 0.0
    %1155 = vmatprep.subr.mxu0 0.0
    %1156 = vmatpush2.msra.mxu0 0.0
    %1157 = vmatprep.subr.mxu0 0.0
    %1158 = vmatpush2.msra.mxu0 0.0
    %1159 = vmatprep.subr.mxu0 0.0
    %1160 = vmatpush2.msra.mxu0 0.0
    %1161 = vmatprep.subr.mxu0 0.0
    %1162 = vmatpush2.msra.mxu0 0.0
    %1163 = vmatprep.subr.mxu0 0.0
    %1164 = vmatpush2.msra.mxu0 0.0
    %1165 = vmatprep.subr.mxu0 0.0
    %1166 = vmatpush2.msra.mxu0 0.0
    %1167 = vmatprep.subr.mxu0 0.0
    %1168 = vmatpush2.msra.mxu0 0.0
    %1169 = vmatprep.subr.mxu0 0.0
    %1170 = vmatpush2.msra.mxu0 0.0
    %1171 = vmatprep.subr.mxu0 0.0
    %1172 = vmatpush2.msra.mxu0 0.0
    %1173 = vmatprep.subr.mxu0 0.0
    %1174 = vmatpush2.msra.mxu0 0.0
    %1175 = vmatprep.subr.mxu0 0.0
    %1176 = vmatpush2.msra.mxu0 0.0
    %1177 = vmatprep.subr.mxu0 0.0
    %1178 = vmatpush2.msra.mxu0 0.0
    %1179 = vmatprep.mubr.f32.mxu0 0.0
    %1180 = vmatmul.mubr.f32.gmra.mxu0 %v1113
    %v1181 = vpop.f32.mrf.mxu0
    %v1182 = vpop.f32.mrf.mxu0
    %v1183 = vadd.f32 0.0, %v1182
    %1184 = vdwg.mxu0
    %v1185 = vadd.f32 %v1183, %v253
    %v1186 = vxor.u32 %v1185, 2147483648
    %v1187 = vmul.f32 %v1186, 1.442695
    %v1188 = vpow.pop %v1187
    %v1189 = vadd.f32 %v1188, 1.0
    %v1190 = vrcp.pop %v1189
    %v1191 = vmul.f32 1.0, %v1190
    %v1192 = vtanh.pop %v1185
    %v1193 = vmul.f32 %v1191, %v1071
    %1195 = vrot.lane.b32.xlu0 %v1192, 64
    %v1196 = vpop.permute.xlu0 %1195
    %v1198 = vmul.f32 %v1191, %v1196
    %1200 = vrot.lane.b32.xlu0 %v1198, 32
    %v1201 = vpop.permute.xlu0 %1200
    %v1203 = vadd.f32 %v1193, %v1201
    %v1204 = vtanh.pop %v1203
    %1206 = vrot.lane.b32.xlu0 %v1204, 64
    %v1207 = vpop.permute.xlu0 %1206
    %v1209 = vmul.f32 %v1191, %v1207
    %v1210 = vld [vmem:[%s5] sm:$0x1]
    %v1211 = vld [vmem:[#allocation2] sm:$0x1]
    %v1213 = vlaneseq
    %v1214 = vshrl.u32 %v1213, 7
    %v1215 = vsub.s32 0, %v1214
    %v1216 = vrot.slane %v1210, %v1215
    %1217 = vrot.lane.b32.xlu0 %v1216, 96
    %v1218 = vpop.permute.xlu0 %1217
    %v1220 = vmul.f32 %v1209, %v1218
    %1222 = vrot.lane.b32.xlu0 %v1220, 32
    %v1223 = vpop.permute.xlu0 %1222
    %v1225 = vsel %vm172, %v1223, 0.0
    %1226 = vadd.xlane.f32.xlu0 %v1225
    %v1227 = vpop.xlane.xlu0 %1226
    %v1229 = vlaneseq
    %v1230 = vshrl.u32 %v1229, 7
    %v1231 = vsub.s32 0, %v1230
    %v1232 = vrot.slane %v1211, %v1231
    %v1234 = vadd.f32 %v1227, %v1232
    %vm1235 = vcmask 7168
    %1236 = vst.msk [vmem:[%s7] sm:$0xff] %vm1235, %v1234
    // Predicated region
    $region34: #{tpu_custom_call.1} parent=1 // pred_check
      _
    $region35: #{tpu_custom_call.1} parent=1 // pred_check_branch
      %1238 = sbr.rel (0) target = $region37
    $region36: #{tpu_custom_call.1} parent=1 // pred_region
      _
    $region37: #{tpu_custom_call.1} parent=1 // pred_fallthru
      _
    // Predicated region
    $region38: #{tpu_custom_call.1} parent=1 // pred_check
      _
    $region39: #{tpu_custom_call.1} parent=1 // pred_check_branch
      %1240 = sbr.rel (0) target = $region41
    $region40: #{tpu_custom_call.1} parent=1 // pred_region
      _
    $region41: #{tpu_custom_call.1} parent=1 // pred_fallthru
      _
    %1241 = vsyncpa [#allocation4], 1

</llo_original>
